<compile_context>
chip_gen: v7x
topology: tpu7x:2x2x1
jax: 0.10.0
libtpu: 0.0.40
codegen_flags: <defaults>
</compile_context>

<pallas_src>
import functools

import jax
import jax.numpy as jnp
import numpy as np
from jax import lax
from jax.experimental import pallas as pl
from jax.experimental.pallas import tpu as pltpu

_SUBLANE = 8           # f32 sublane granularity
_MAX_BATCH_BLOCK = 64  # rows per 'parallel' batch block (multiple of 8)


# ----------------------------- Pallas kernel ------------------------------ #
def _lstm_kernel(emb_ref, w_ih_t_ref, w_hh_t_ref, b_ref, hc_ref, x_scr, gx_scr):
    """grid = (batch_blocks, n_layers); one step == one layer of one batch block.

    emb_ref:    (seq*b_blk, emb)    embedded inputs, time folded into rows
    w_ih_t_ref: (in_dim, 4*hid)     pre-transposed input-to-hidden weight
    w_hh_t_ref: (hid, 4*hid)        pre-transposed hidden-to-hidden weight
    b_ref:      (1, 4*hid)          b_ih + b_hh for this layer (f32)
    hc_ref:     (b_blk, 2*hid)      packed [h_T | c_T] for this layer/block
    x_scr:      (seq*b_blk, hid)    carries layer output seq -> next layer
    gx_scr:     (seq*b_blk, 4*hid)  hoisted x @ W_ih^T + bias, all timesteps
    """
    layer = pl.program_id(1)
    n_layers = pl.num_programs(1)
    hid = w_hh_t_ref.shape[0]
    b_blk = hc_ref.shape[0]
    seq = x_scr.shape[0] // b_blk

    w_hh_t = w_hh_t_ref[...]          # (hid, 4*hid), already transposed
    mm_dtype = w_hh_t.dtype           # matmul operand dtype (f32 or bf16)
    bias = b_ref[...]                 # (1, 4*hid), f32

    # Hoisted input-to-hidden matmul for the whole sequence (no time
    # dependence), bias folded in so the serial loop never touches it.
    # Layer 0 consumes the embedded tokens directly; deeper layers consume
    # the previous layer's output sequence in x_scr.
    @pl.when(layer == 0)
    def _():
        gx_scr[...] = jnp.dot(emb_ref[...], w_ih_t_ref[...],
                              preferred_element_type=jnp.float32) + bias

    @pl.when(layer > 0)
    def _():
        gx_scr[...] = jnp.dot(x_scr[...], w_ih_t_ref[...],
                              preferred_element_type=jnp.float32) + bias

    # The last layer's output sequence is never read -> skip its stores.
    write_seq = layer + 1 < n_layers

    def step(t, carry):
        h_prev, c_prev = carry
        off = pl.multiple_of(t * b_blk, b_blk)          # sublane-aligned rows
        gx = gx_scr[pl.ds(off, b_blk), :]               # (b_blk, 4*hid)

        # TODO(synk): explicit MXU RHS residency (matmul_push_rhs) here.
        gates = gx + jnp.dot(h_prev.astype(mm_dtype), w_hh_t,
                             preferred_element_type=jnp.float32)

        # Lane-dense nonlinearities on the full 4*hid width, then slice per
        # gate (PyTorch gate order i, f, g, o).  With hid a multiple of 128
        # the slices fall on vreg boundaries and are free.
        sig = jax.nn.sigmoid(gates)
        tnh = jnp.tanh(gates)
        i_g = sig[:, 0 * hid:1 * hid]
        f_g = sig[:, 1 * hid:2 * hid]
        g_g = tnh[:, 2 * hid:3 * hid]
        o_g = sig[:, 3 * hid:4 * hid]

        c_new = f_g * c_prev + i_g * g_g
        h_new = o_g * jnp.tanh(c_new)

        @pl.when(write_seq)
        def _():
            x_scr[pl.ds(off, b_blk), :] = h_new.astype(x_scr.dtype)

        return h_new, c_new

    h0 = jnp.zeros((b_blk, hid), jnp.float32)
    c0 = jnp.zeros((b_blk, hid), jnp.float32)
    # Bounded unroll: LLO scheduling visibility without exploding vreg live
    # ranges when seq is large; (h, c) stay in vregs across steps.
    h_T, c_T = lax.fori_loop(0, seq, step, (h0, c0), unroll=min(seq, 8))

    # Packed [h | c] output block: one writeback DMA per (layer, batch block).
    hc_ref[:, 0:hid] = h_T
    hc_ref[:, hid:2 * hid] = c_T


# ------------------------------ JAX wrapper -------------------------------- #
def _round_up(x, m):
    return ((x + m - 1) // m) * m


@functools.partial(jax.jit, static_argnames=("matmul_dtype",))
def encoder_forward(src, emb_table, w_ih, w_hh, bias, *,
                    matmul_dtype=jnp.float32):
    """Encoder.forward: returns (hidden, cell), each (n_layers, batch, hid)."""
    # Embedding lookup (gather) stays in XLA glue.  Dropout == identity (eval).
    embedded = emb_table[src].astype(jnp.float32)          # (seq, batch, emb)
    seq, batch, emb = embedded.shape
    n_layers, four_hid, hid = w_hh.shape
    # Stacked W_ih across layers requires emb_dim == hid_dim (packing
    # limitation of this synthetic setup, not of the kernel structure).
    assert emb == hid and four_hid == 4 * hid

    # Pad batch to the sublane granularity, then split into batch blocks that
    # become a 'parallel' grid axis (megacore sharding on v7x; also bounds
    # per-core scratch VMEM).  Zero-padded rows never mix with real rows.
    batch_p = max(_SUBLANE, _round_up(batch, _SUBLANE))
    b_blk = min(_MAX_BATCH_BLOCK, batch_p)
    batch_p = _round_up(batch_p, b_blk)
    n_bb = batch_p // b_blk

    emb_p = jnp.pad(embedded, ((0, 0), (0, batch_p - batch), (0, 0)))
    # (seq, batch_p, emb) -> (n_bb, seq*b_blk, emb): per batch block, time is
    # folded into rows (row = t*b_blk + b) so the kernel stays sublane-dense.
    emb_blocks = (emb_p.reshape(seq, n_bb, b_blk, emb)
                  .transpose(1, 0, 2, 3)
                  .reshape(n_bb, seq * b_blk, emb)
                  .astype(matmul_dtype))

    # Pre-transpose (and optionally down-cast) weights once in the wrapper so
    # the kernel's MXU consumes them directly (no in-kernel XLU transpose).
    w_ih_t = jnp.transpose(w_ih, (0, 2, 1)).astype(matmul_dtype)   # (L, emb, 4H)
    w_hh_t = jnp.transpose(w_hh, (0, 2, 1)).astype(matmul_dtype)   # (L, hid, 4H)
    bias_f32 = bias.astype(jnp.float32)                            # (L, 1, 4H)

    hc = pl.pallas_call(
        _lstm_kernel,
        out_shape=jax.ShapeDtypeStruct((n_layers, batch_p, 2 * hid),
                                       jnp.float32),
        grid_spec=pltpu.PrefetchScalarGridSpec(
            num_scalar_prefetch=0,
            # Layer axis trailing so the x_scr carry across layers is coherent
            # within each batch block.
            grid=(n_bb, n_layers),
            in_specs=[
                # Block index depends only on bb -> not re-DMA'd per layer.
                pl.BlockSpec((None, seq * b_blk, emb), lambda bb, l: (bb, 0, 0)),
                pl.BlockSpec((None, emb, four_hid), lambda bb, l: (l, 0, 0)),
                pl.BlockSpec((None, hid, four_hid), lambda bb, l: (l, 0, 0)),
                pl.BlockSpec((None, 1, four_hid), lambda bb, l: (l, 0, 0)),
            ],
            out_specs=pl.BlockSpec((None, b_blk, 2 * hid),
                                   lambda bb, l: (l, bb, 0)),
            scratch_shapes=[
                pltpu.VMEM((seq * b_blk, hid), matmul_dtype),       # layer I/O
                pltpu.VMEM((seq * b_blk, four_hid), jnp.float32),   # hoisted gx
            ],
        ),
        compiler_params=pltpu.CompilerParams(
            # Batch blocks are independent; layers are inherently serial.
            dimension_semantics=("parallel", "arbitrary")),
    )(emb_blocks, w_ih_t, w_hh_t, bias_f32)

    # Drop batch padding and unpack [h | c].
    hidden = hc[:, :batch, :hid]
    cell = hc[:, :batch, hid:2 * hid]
    return hidden, cell


# -------------------------- pure-JAX reference ----------------------------- #
def encoder_reference(src, emb_table, w_ih, w_hh, bias,
                      matmul_dtype=jnp.float32):
    embedded = emb_table[src].astype(jnp.float32)
    n_layers, four_hid, hid = w_hh.shape
    batch = embedded.shape[1]

    x = embedded
    hs, cs = [], []
    for l in range(n_layers):
        wih_t = w_ih[l].T.astype(matmul_dtype)
        whh_t = w_hh[l].T.astype(matmul_dtype)
        b = bias[l].astype(jnp.float32)

        def step(carry, x_t):
            h, c = carry
            gates = (jnp.dot(x_t.astype(matmul_dtype), wih_t,
                             preferred_element_type=jnp.float32)
                     + jnp.dot(h.astype(matmul_dtype), whh_t,
                               preferred_element_type=jnp.float32)
                     + b)
            i = jax.nn.sigmoid(gates[:, 0 * hid:1 * hid])
            f = jax.nn.sigmoid(gates[:, 1 * hid:2 * hid])
            g = jnp.tanh(gates[:, 2 * hid:3 * hid])
            o = jax.nn.sigmoid(gates[:, 3 * hid:4 * hid])
            c = f * c + i * g
            h = o * jnp.tanh(c)
            return (h, c), h

        init = (jnp.zeros((batch, hid), jnp.float32),
                jnp.zeros((batch, hid), jnp.float32))
        (h_T, c_T), out_seq = lax.scan(step, init, x)
        hs.append(h_T)
        cs.append(c_T)
        x = out_seq
    return jnp.stack(hs), jnp.stack(cs)


# --------------------------------- main ------------------------------------ #
if __name__ == "__main__":
    # Small shapes consistent with Encoder(input_dim, emb_dim, hid_dim, n_layers, dropout)
    input_dim = 50      # vocab size
    emb_dim = 32
    hid_dim = 32
    n_layers = 2
    seq_len = 8
    batch = 2

    key = jax.random.PRNGKey(0)
    k_emb, k_src, k_wih, k_whh, k_bih, k_bhh = jax.random.split(key, 6)

    bound = 1.0 / np.sqrt(hid_dim)
    emb_table = jax.random.normal(k_emb, (input_dim, emb_dim), jnp.float32)
    w_ih = jax.random.uniform(k_wih, (n_layers, 4 * hid_dim, emb_dim),
                              jnp.float32, -bound, bound)
    w_hh = jax.random.uniform(k_whh, (n_layers, 4 * hid_dim, hid_dim),
                              jnp.float32, -bound, bound)
    b_ih = jax.random.uniform(k_bih, (n_layers, 4 * hid_dim),
                              jnp.float32, -bound, bound)
    b_hh = jax.random.uniform(k_bhh, (n_layers, 4 * hid_dim),
                              jnp.float32, -bound, bound)
    bias = (b_ih + b_hh).reshape(n_layers, 1, 4 * hid_dim)

    src = jax.random.randint(k_src, (seq_len, batch), 0, input_dim, jnp.int32)

    # f32 matmul operands: must match the f32 reference tightly.
    hidden, cell = encoder_forward(src, emb_table, w_ih, w_hh, bias,
                                   matmul_dtype=jnp.float32)
    jax.block_until_ready((hidden, cell))
    h_ref, c_ref = encoder_reference(src, emb_table, w_ih, w_hh, bias,
                                     matmul_dtype=jnp.float32)
    np.testing.assert_allclose(np.asarray(hidden), np.asarray(h_ref),
                               rtol=1e-4, atol=1e-4)
    np.testing.assert_allclose(np.asarray(cell), np.asarray(c_ref),
                               rtol=1e-4, atol=1e-4)
    assert hidden.shape == (n_layers, batch, hid_dim)
    assert cell.shape == (n_layers, batch, hid_dim)

    # bf16 matmul operands (v6e/v7x fast path): compare against a reference
    # that quantizes its matmul operands identically.
    hidden_bf, cell_bf = encoder_forward(src, emb_table, w_ih, w_hh, bias,
                                         matmul_dtype=jnp.bfloat16)
    jax.block_until_ready((hidden_bf, cell_bf))
    h_ref_bf, c_ref_bf = encoder_reference(src, emb_table, w_ih, w_hh, bias,
                                           matmul_dtype=jnp.bfloat16)
    np.testing.assert_allclose(np.asarray(hidden_bf), np.asarray(h_ref_bf),
                               rtol=1e-2, atol=1e-2)
    np.testing.assert_allclose(np.asarray(cell_bf), np.asarray(c_ref_bf),
                               rtol=1e-2, atol=1e-2)

    print("KERNEL_OK")
</pallas_src>

<mosaic_0001>
module attributes {stable_mosaic.version = 11 : i64} {
  func.func @_lstm_kernel(%arg0: i32, %arg1: i32, %arg2: memref<1x64x32xf32, #tpu.memory_space<vmem>>, %arg3: memref<1x32x128xf32, #tpu.memory_space<vmem>>, %arg4: memref<1x32x128xf32, #tpu.memory_space<vmem>>, %arg5: memref<1x1x128xf32, #tpu.memory_space<vmem>>, %arg6: memref<1x8x64xf32, #tpu.memory_space<vmem>>, %arg7: memref<64x32xf32, #tpu.memory_space<vmem>>, %arg8: memref<64x128xf32, #tpu.memory_space<vmem>>) attributes {dimension_semantics = [#tpu.dimension_semantics<parallel>, #tpu.dimension_semantics<arbitrary>], iteration_bounds = array<i64: 1, 2>, scalar_prefetch = 0 : i64, scratch_operands = 2 : i64, tpu.core_type = #tpu.core_type<tc>, window_params = [{transform_indices = @transform_0, window_bounds = array<i64: 1, 64, 32>}, {transform_indices = @transform_1, window_bounds = array<i64: 1, 32, 128>}, {transform_indices = @transform_2, window_bounds = array<i64: 1, 32, 128>}, {transform_indices = @transform_3, window_bounds = array<i64: 1, 1, 128>}, {transform_indices = @transform_4, window_bounds = array<i64: 1, 8, 64>}]} {
    %c0 = arith.constant 0 : index
    %c0_0 = arith.constant 0 : index
    %c0_1 = arith.constant 0 : index
    %0 = vector.load %arg4[%c0, %c0_0, %c0_1] : memref<1x32x128xf32, #tpu.memory_space<vmem>>, vector<1x32x128xf32>
    %1 = vector.shape_cast %0 : vector<1x32x128xf32> to vector<32x128xf32>
    %c0_2 = arith.constant 0 : index
    %c0_3 = arith.constant 0 : index
    %c0_4 = arith.constant 0 : index
    %2 = vector.load %arg5[%c0_2, %c0_3, %c0_4] : memref<1x1x128xf32, #tpu.memory_space<vmem>>, vector<1x1x128xf32>
    %3 = vector.shape_cast %2 : vector<1x1x128xf32> to vector<1x128xf32>
    %c0_i32 = arith.constant 0 : i32
    %4 = arith.cmpi eq, %arg1, %c0_i32 : i32
    %5 = arith.extui %4 : i1 to i32
    %c0_i32_5 = arith.constant 0 : i32
    %6 = arith.cmpi ne, %5, %c0_i32_5 : i32
    scf.if %6 {
      %c0_57 = arith.constant 0 : index
      %c0_58 = arith.constant 0 : index
      %c0_59 = arith.constant 0 : index
      %204 = vector.load %arg2[%c0_57, %c0_58, %c0_59] : memref<1x64x32xf32, #tpu.memory_space<vmem>>, vector<1x64x32xf32>
      %205 = vector.shape_cast %204 : vector<1x64x32xf32> to vector<64x32xf32>
      %c0_60 = arith.constant 0 : index
      %c0_61 = arith.constant 0 : index
      %c0_62 = arith.constant 0 : index
      %206 = vector.load %arg3[%c0_60, %c0_61, %c0_62] : memref<1x32x128xf32, #tpu.memory_space<vmem>>, vector<1x32x128xf32>
      %207 = vector.shape_cast %206 : vector<1x32x128xf32> to vector<32x128xf32>
      %cst_63 = arith.constant dense<0.000000e+00> : vector<64x128xf32>
      %208 = tpu.matmul %205, %207, %cst_63 {dimension_numbers = #tpu.dot_dimension_numbers<[1], [0], [0], [1], [0, 0, 1, 1], [], []>} : vector<64x32xf32>, vector<32x128xf32>, vector<64x128xf32> -> vector<64x128xf32>
      %209 = vector.broadcast %3 : vector<1x128xf32> to vector<64x128xf32>
      %210 = arith.addf %208, %209 : vector<64x128xf32>
      %c0_64 = arith.constant 0 : index
      %c0_65 = arith.constant 0 : index
      %211 = vector.load %arg8[%c0_64, %c0_65] : memref<64x128xf32, #tpu.memory_space<vmem>>, vector<64x128xf32>
      tpu.vector_store %arg8[%c0_64, %c0_65], %210 {strides = array<i32>} : memref<64x128xf32, #tpu.memory_space<vmem>>, vector<64x128xf32>,
    } else {
    }
    %c0_i32_6 = arith.constant 0 : i32
    %7 = arith.cmpi sgt, %arg1, %c0_i32_6 : i32
    %8 = arith.extui %7 : i1 to i32
    %c0_i32_7 = arith.constant 0 : i32
    %9 = arith.cmpi ne, %8, %c0_i32_7 : i32
    scf.if %9 {
      %c0_57 = arith.constant 0 : index
      %c0_58 = arith.constant 0 : index
      %204 = vector.load %arg7[%c0_57, %c0_58] : memref<64x32xf32, #tpu.memory_space<vmem>>, vector<64x32xf32>
      %c0_59 = arith.constant 0 : index
      %c0_60 = arith.constant 0 : index
      %c0_61 = arith.constant 0 : index
      %205 = vector.load %arg3[%c0_59, %c0_60, %c0_61] : memref<1x32x128xf32, #tpu.memory_space<vmem>>, vector<1x32x128xf32>
      %206 = vector.shape_cast %205 : vector<1x32x128xf32> to vector<32x128xf32>
      %cst_62 = arith.constant dense<0.000000e+00> : vector<64x128xf32>
      %207 = tpu.matmul %204, %206, %cst_62 {dimension_numbers = #tpu.dot_dimension_numbers<[1], [0], [0], [1], [0, 0, 1, 1], [], []>} : vector<64x32xf32>, vector<32x128xf32>, vector<64x128xf32> -> vector<64x128xf32>
      %208 = vector.broadcast %3 : vector<1x128xf32> to vector<64x128xf32>
      %209 = arith.addf %207, %208 : vector<64x128xf32>
      %c0_63 = arith.constant 0 : index
      %c0_64 = arith.constant 0 : index
      %210 = vector.load %arg8[%c0_63, %c0_64] : memref<64x128xf32, #tpu.memory_space<vmem>>, vector<64x128xf32>
      tpu.vector_store %arg8[%c0_63, %c0_64], %209 {strides = array<i32>} : memref<64x128xf32, #tpu.memory_space<vmem>>, vector<64x128xf32>,
    } else {
    }
    %c1_i32 = arith.constant 1 : i32
    %10 = arith.addi %arg1, %c1_i32 : i32
    %c2_i32 = arith.constant 2 : i32
    %11 = arith.cmpi slt, %10, %c2_i32 : i32
    %cst = arith.constant 0.000000e+00 : f32
    %12 = vector.broadcast %cst : f32 to vector<8x32xf32>
    %cst_8 = arith.constant 0.000000e+00 : f32
    %13 = vector.broadcast %cst_8 : f32 to vector<8x32xf32>
    %c0_i32_9 = arith.constant 0 : i32
    %c8_i32 = arith.constant 8 : i32
    %14 = arith.muli %c0_i32_9, %c8_i32 : i32
    %15 = tpu.assume_multiple %14, 8 : i32
    %16 = arith.index_cast %15 : i32 to index
    %c0_10 = arith.constant 0 : index
    %17 = vector.load %arg8[%16, %c0_10] : memref<64x128xf32, #tpu.memory_space<vmem>>, vector<8x128xf32>
    %cst_11 = arith.constant dense<0.000000e+00> : vector<8x128xf32>
    %18 = tpu.matmul %12, %1, %cst_11 {dimension_numbers = #tpu.dot_dimension_numbers<[1], [0], [0], [1], [0, 0, 1, 1], [], []>} : vector<8x32xf32>, vector<32x128xf32>, vector<8x128xf32> -> vector<8x128xf32>
    %19 = arith.addf %17, %18 : vector<8x128xf32>
    %20 = arith.negf %19 : vector<8x128xf32>
    %21 = math.exp %20 : vector<8x128xf32>
    %cst_12 = arith.constant 1.000000e+00 : f32
    %22 = vector.broadcast %cst_12 : f32 to vector<8x128xf32>
    %23 = arith.addf %22, %21 : vector<8x128xf32>
    %24 = arith.divf %22, %23 : vector<8x128xf32>
    %25 = math.tanh %19 : vector<8x128xf32>
    %26 = vector.extract_strided_slice %24 {offsets = [0, 0], sizes = [8, 32], strides = [1, 1]} : vector<8x128xf32> to vector<8x32xf32>
    %27 = vector.extract_strided_slice %24 {offsets = [0, 32], sizes = [8, 32], strides = [1, 1]} : vector<8x128xf32> to vector<8x32xf32>
    %28 = vector.extract_strided_slice %25 {offsets = [0, 64], sizes = [8, 32], strides = [1, 1]} : vector<8x128xf32> to vector<8x32xf32>
    %29 = vector.extract_strided_slice %24 {offsets = [0, 96], sizes = [8, 32], strides = [1, 1]} : vector<8x128xf32> to vector<8x32xf32>
    %30 = arith.mulf %27, %13 : vector<8x32xf32>
    %31 = arith.mulf %26, %28 : vector<8x32xf32>
    %32 = arith.addf %30, %31 : vector<8x32xf32>
    %33 = math.tanh %32 : vector<8x32xf32>
    %34 = arith.mulf %29, %33 : vector<8x32xf32>
    %35 = arith.extui %11 : i1 to i32
    %c0_i32_13 = arith.constant 0 : i32
    %36 = arith.cmpi ne, %35, %c0_i32_13 : i32
    scf.if %36 {
      %204 = arith.index_cast %15 : i32 to index
      %c0_57 = arith.constant 0 : index
      %205 = vector.load %arg7[%204, %c0_57] : memref<64x32xf32, #tpu.memory_space<vmem>>, vector<8x32xf32>
      tpu.vector_store %arg7[%204, %c0_57], %34 {strides = array<i32>} : memref<64x32xf32, #tpu.memory_space<vmem>>, vector<8x32xf32>,
    } else {
    }
    %c1_i32_14 = arith.constant 1 : i32
    %c8_i32_15 = arith.constant 8 : i32
    %37 = arith.muli %c1_i32_14, %c8_i32_15 : i32
    %38 = tpu.assume_multiple %37, 8 : i32
    %39 = arith.index_cast %38 : i32 to index
    %c0_16 = arith.constant 0 : index
    %40 = vector.load %arg8[%39, %c0_16] : memref<64x128xf32, #tpu.memory_space<vmem>>, vector<8x128xf32>
    %cst_17 = arith.constant dense<0.000000e+00> : vector<8x128xf32>
    %41 = tpu.matmul %34, %1, %cst_17 {dimension_numbers = #tpu.dot_dimension_numbers<[1], [0], [0], [1], [0, 0, 1, 1], [], []>} : vector<8x32xf32>, vector<32x128xf32>, vector<8x128xf32> -> vector<8x128xf32>
    %42 = arith.addf %40, %41 : vector<8x128xf32>
    %43 = arith.negf %42 : vector<8x128xf32>
    %44 = math.exp %43 : vector<8x128xf32>
    %cst_18 = arith.constant 1.000000e+00 : f32
    %45 = vector.broadcast %cst_18 : f32 to vector<8x128xf32>
    %46 = arith.addf %45, %44 : vector<8x128xf32>
    %47 = arith.divf %45, %46 : vector<8x128xf32>
    %48 = math.tanh %42 : vector<8x128xf32>
    %49 = vector.extract_strided_slice %47 {offsets = [0, 0], sizes = [8, 32], strides = [1, 1]} : vector<8x128xf32> to vector<8x32xf32>
    %50 = vector.extract_strided_slice %47 {offsets = [0, 32], sizes = [8, 32], strides = [1, 1]} : vector<8x128xf32> to vector<8x32xf32>
    %51 = vector.extract_strided_slice %48 {offsets = [0, 64], sizes = [8, 32], strides = [1, 1]} : vector<8x128xf32> to vector<8x32xf32>
    %52 = vector.extract_strided_slice %47 {offsets = [0, 96], sizes = [8, 32], strides = [1, 1]} : vector<8x128xf32> to vector<8x32xf32>
    %53 = arith.mulf %50, %32 : vector<8x32xf32>
    %54 = arith.mulf %49, %51 : vector<8x32xf32>
    %55 = arith.addf %53, %54 : vector<8x32xf32>
    %56 = math.tanh %55 : vector<8x32xf32>
    %57 = arith.mulf %52, %56 : vector<8x32xf32>
    %58 = arith.extui %11 : i1 to i32
    %c0_i32_19 = arith.constant 0 : i32
    %59 = arith.cmpi ne, %58, %c0_i32_19 : i32
    scf.if %59 {
      %204 = arith.index_cast %38 : i32 to index
      %c0_57 = arith.constant 0 : index
      %205 = vector.load %arg7[%204, %c0_57] : memref<64x32xf32, #tpu.memory_space<vmem>>, vector<8x32xf32>
      tpu.vector_store %arg7[%204, %c0_57], %57 {strides = array<i32>} : memref<64x32xf32, #tpu.memory_space<vmem>>, vector<8x32xf32>,
    } else {
    }
    %c2_i32_20 = arith.constant 2 : i32
    %c8_i32_21 = arith.constant 8 : i32
    %60 = arith.muli %c2_i32_20, %c8_i32_21 : i32
    %61 = tpu.assume_multiple %60, 8 : i32
    %62 = arith.index_cast %61 : i32 to index
    %c0_22 = arith.constant 0 : index
    %63 = vector.load %arg8[%62, %c0_22] : memref<64x128xf32, #tpu.memory_space<vmem>>, vector<8x128xf32>
    %cst_23 = arith.constant dense<0.000000e+00> : vector<8x128xf32>
    %64 = tpu.matmul %57, %1, %cst_23 {dimension_numbers = #tpu.dot_dimension_numbers<[1], [0], [0], [1], [0, 0, 1, 1], [], []>} : vector<8x32xf32>, vector<32x128xf32>, vector<8x128xf32> -> vector<8x128xf32>
    %65 = arith.addf %63, %64 : vector<8x128xf32>
    %66 = arith.negf %65 : vector<8x128xf32>
    %67 = math.exp %66 : vector<8x128xf32>
    %cst_24 = arith.constant 1.000000e+00 : f32
    %68 = vector.broadcast %cst_24 : f32 to vector<8x128xf32>
    %69 = arith.addf %68, %67 : vector<8x128xf32>
    %70 = arith.divf %68, %69 : vector<8x128xf32>
    %71 = math.tanh %65 : vector<8x128xf32>
    %72 = vector.extract_strided_slice %70 {offsets = [0, 0], sizes = [8, 32], strides = [1, 1]} : vector<8x128xf32> to vector<8x32xf32>
    %73 = vector.extract_strided_slice %70 {offsets = [0, 32], sizes = [8, 32], strides = [1, 1]} : vector<8x128xf32> to vector<8x32xf32>
    %74 = vector.extract_strided_slice %71 {offsets = [0, 64], sizes = [8, 32], strides = [1, 1]} : vector<8x128xf32> to vector<8x32xf32>
    %75 = vector.extract_strided_slice %70 {offsets = [0, 96], sizes = [8, 32], strides = [1, 1]} : vector<8x128xf32> to vector<8x32xf32>
    %76 = arith.mulf %73, %55 : vector<8x32xf32>
    %77 = arith.mulf %72, %74 : vector<8x32xf32>
    %78 = arith.addf %76, %77 : vector<8x32xf32>
    %79 = math.tanh %78 : vector<8x32xf32>
    %80 = arith.mulf %75, %79 : vector<8x32xf32>
    %81 = arith.extui %11 : i1 to i32
    %c0_i32_25 = arith.constant 0 : i32
    %82 = arith.cmpi ne, %81, %c0_i32_25 : i32
    scf.if %82 {
      %204 = arith.index_cast %61 : i32 to index
      %c0_57 = arith.constant 0 : index
      %205 = vector.load %arg7[%204, %c0_57] : memref<64x32xf32, #tpu.memory_space<vmem>>, vector<8x32xf32>
      tpu.vector_store %arg7[%204, %c0_57], %80 {strides = array<i32>} : memref<64x32xf32, #tpu.memory_space<vmem>>, vector<8x32xf32>,
    } else {
    }
    %c3_i32 = arith.constant 3 : i32
    %c8_i32_26 = arith.constant 8 : i32
    %83 = arith.muli %c3_i32, %c8_i32_26 : i32
    %84 = tpu.assume_multiple %83, 8 : i32
    %85 = arith.index_cast %84 : i32 to index
    %c0_27 = arith.constant 0 : index
    %86 = vector.load %arg8[%85, %c0_27] : memref<64x128xf32, #tpu.memory_space<vmem>>, vector<8x128xf32>
    %cst_28 = arith.constant dense<0.000000e+00> : vector<8x128xf32>
    %87 = tpu.matmul %80, %1, %cst_28 {dimension_numbers = #tpu.dot_dimension_numbers<[1], [0], [0], [1], [0, 0, 1, 1], [], []>} : vector<8x32xf32>, vector<32x128xf32>, vector<8x128xf32> -> vector<8x128xf32>
    %88 = arith.addf %86, %87 : vector<8x128xf32>
    %89 = arith.negf %88 : vector<8x128xf32>
    %90 = math.exp %89 : vector<8x128xf32>
    %cst_29 = arith.constant 1.000000e+00 : f32
    %91 = vector.broadcast %cst_29 : f32 to vector<8x128xf32>
    %92 = arith.addf %91, %90 : vector<8x128xf32>
    %93 = arith.divf %91, %92 : vector<8x128xf32>
    %94 = math.tanh %88 : vector<8x128xf32>
    %95 = vector.extract_strided_slice %93 {offsets = [0, 0], sizes = [8, 32], strides = [1, 1]} : vector<8x128xf32> to vector<8x32xf32>
    %96 = vector.extract_strided_slice %93 {offsets = [0, 32], sizes = [8, 32], strides = [1, 1]} : vector<8x128xf32> to vector<8x32xf32>
    %97 = vector.extract_strided_slice %94 {offsets = [0, 64], sizes = [8, 32], strides = [1, 1]} : vector<8x128xf32> to vector<8x32xf32>
    %98 = vector.extract_strided_slice %93 {offsets = [0, 96], sizes = [8, 32], strides = [1, 1]} : vector<8x128xf32> to vector<8x32xf32>
    %99 = arith.mulf %96, %78 : vector<8x32xf32>
    %100 = arith.mulf %95, %97 : vector<8x32xf32>
    %101 = arith.addf %99, %100 : vector<8x32xf32>
    %102 = math.tanh %101 : vector<8x32xf32>
    %103 = arith.mulf %98, %102 : vector<8x32xf32>
    %104 = arith.extui %11 : i1 to i32
    %c0_i32_30 = arith.constant 0 : i32
    %105 = arith.cmpi ne, %104, %c0_i32_30 : i32
    scf.if %105 {
      %204 = arith.index_cast %84 : i32 to index
      %c0_57 = arith.constant 0 : index
      %205 = vector.load %arg7[%204, %c0_57] : memref<64x32xf32, #tpu.memory_space<vmem>>, vector<8x32xf32>
      tpu.vector_store %arg7[%204, %c0_57], %103 {strides = array<i32>} : memref<64x32xf32, #tpu.memory_space<vmem>>, vector<8x32xf32>,
    } else {
    }
    %c4_i32 = arith.constant 4 : i32
    %c8_i32_31 = arith.constant 8 : i32
    %106 = arith.muli %c4_i32, %c8_i32_31 : i32
    %107 = tpu.assume_multiple %106, 8 : i32
    %108 = arith.index_cast %107 : i32 to index
    %c0_32 = arith.constant 0 : index
    %109 = vector.load %arg8[%108, %c0_32] : memref<64x128xf32, #tpu.memory_space<vmem>>, vector<8x128xf32>
    %cst_33 = arith.constant dense<0.000000e+00> : vector<8x128xf32>
    %110 = tpu.matmul %103, %1, %cst_33 {dimension_numbers = #tpu.dot_dimension_numbers<[1], [0], [0], [1], [0, 0, 1, 1], [], []>} : vector<8x32xf32>, vector<32x128xf32>, vector<8x128xf32> -> vector<8x128xf32>
    %111 = arith.addf %109, %110 : vector<8x128xf32>
    %112 = arith.negf %111 : vector<8x128xf32>
    %113 = math.exp %112 : vector<8x128xf32>
    %cst_34 = arith.constant 1.000000e+00 : f32
    %114 = vector.broadcast %cst_34 : f32 to vector<8x128xf32>
    %115 = arith.addf %114, %113 : vector<8x128xf32>
    %116 = arith.divf %114, %115 : vector<8x128xf32>
    %117 = math.tanh %111 : vector<8x128xf32>
    %118 = vector.extract_strided_slice %116 {offsets = [0, 0], sizes = [8, 32], strides = [1, 1]} : vector<8x128xf32> to vector<8x32xf32>
    %119 = vector.extract_strided_slice %116 {offsets = [0, 32], sizes = [8, 32], strides = [1, 1]} : vector<8x128xf32> to vector<8x32xf32>
    %120 = vector.extract_strided_slice %117 {offsets = [0, 64], sizes = [8, 32], strides = [1, 1]} : vector<8x128xf32> to vector<8x32xf32>
    %121 = vector.extract_strided_slice %116 {offsets = [0, 96], sizes = [8, 32], strides = [1, 1]} : vector<8x128xf32> to vector<8x32xf32>
    %122 = arith.mulf %119, %101 : vector<8x32xf32>
    %123 = arith.mulf %118, %120 : vector<8x32xf32>
    %124 = arith.addf %122, %123 : vector<8x32xf32>
    %125 = math.tanh %124 : vector<8x32xf32>
    %126 = arith.mulf %121, %125 : vector<8x32xf32>
    %127 = arith.extui %11 : i1 to i32
    %c0_i32_35 = arith.constant 0 : i32
    %128 = arith.cmpi ne, %127, %c0_i32_35 : i32
    scf.if %128 {
      %204 = arith.index_cast %107 : i32 to index
      %c0_57 = arith.constant 0 : index
      %205 = vector.load %arg7[%204, %c0_57] : memref<64x32xf32, #tpu.memory_space<vmem>>, vector<8x32xf32>
      tpu.vector_store %arg7[%204, %c0_57], %126 {strides = array<i32>} : memref<64x32xf32, #tpu.memory_space<vmem>>, vector<8x32xf32>,
    } else {
    }
    %c5_i32 = arith.constant 5 : i32
    %c8_i32_36 = arith.constant 8 : i32
    %129 = arith.muli %c5_i32, %c8_i32_36 : i32
    %130 = tpu.assume_multiple %129, 8 : i32
    %131 = arith.index_cast %130 : i32 to index
    %c0_37 = arith.constant 0 : index
    %132 = vector.load %arg8[%131, %c0_37] : memref<64x128xf32, #tpu.memory_space<vmem>>, vector<8x128xf32>
    %cst_38 = arith.constant dense<0.000000e+00> : vector<8x128xf32>
    %133 = tpu.matmul %126, %1, %cst_38 {dimension_numbers = #tpu.dot_dimension_numbers<[1], [0], [0], [1], [0, 0, 1, 1], [], []>} : vector<8x32xf32>, vector<32x128xf32>, vector<8x128xf32> -> vector<8x128xf32>
    %134 = arith.addf %132, %133 : vector<8x128xf32>
    %135 = arith.negf %134 : vector<8x128xf32>
    %136 = math.exp %135 : vector<8x128xf32>
    %cst_39 = arith.constant 1.000000e+00 : f32
    %137 = vector.broadcast %cst_39 : f32 to vector<8x128xf32>
    %138 = arith.addf %137, %136 : vector<8x128xf32>
    %139 = arith.divf %137, %138 : vector<8x128xf32>
    %140 = math.tanh %134 : vector<8x128xf32>
    %141 = vector.extract_strided_slice %139 {offsets = [0, 0], sizes = [8, 32], strides = [1, 1]} : vector<8x128xf32> to vector<8x32xf32>
    %142 = vector.extract_strided_slice %139 {offsets = [0, 32], sizes = [8, 32], strides = [1, 1]} : vector<8x128xf32> to vector<8x32xf32>
    %143 = vector.extract_strided_slice %140 {offsets = [0, 64], sizes = [8, 32], strides = [1, 1]} : vector<8x128xf32> to vector<8x32xf32>
    %144 = vector.extract_strided_slice %139 {offsets = [0, 96], sizes = [8, 32], strides = [1, 1]} : vector<8x128xf32> to vector<8x32xf32>
    %145 = arith.mulf %142, %124 : vector<8x32xf32>
    %146 = arith.mulf %141, %143 : vector<8x32xf32>
    %147 = arith.addf %145, %146 : vector<8x32xf32>
    %148 = math.tanh %147 : vector<8x32xf32>
    %149 = arith.mulf %144, %148 : vector<8x32xf32>
    %150 = arith.extui %11 : i1 to i32
    %c0_i32_40 = arith.constant 0 : i32
    %151 = arith.cmpi ne, %150, %c0_i32_40 : i32
    scf.if %151 {
      %204 = arith.index_cast %130 : i32 to index
      %c0_57 = arith.constant 0 : index
      %205 = vector.load %arg7[%204, %c0_57] : memref<64x32xf32, #tpu.memory_space<vmem>>, vector<8x32xf32>
      tpu.vector_store %arg7[%204, %c0_57], %149 {strides = array<i32>} : memref<64x32xf32, #tpu.memory_space<vmem>>, vector<8x32xf32>,
    } else {
    }
    %c6_i32 = arith.constant 6 : i32
    %c8_i32_41 = arith.constant 8 : i32
    %152 = arith.muli %c6_i32, %c8_i32_41 : i32
    %153 = tpu.assume_multiple %152, 8 : i32
    %154 = arith.index_cast %153 : i32 to index
    %c0_42 = arith.constant 0 : index
    %155 = vector.load %arg8[%154, %c0_42] : memref<64x128xf32, #tpu.memory_space<vmem>>, vector<8x128xf32>
    %cst_43 = arith.constant dense<0.000000e+00> : vector<8x128xf32>
    %156 = tpu.matmul %149, %1, %cst_43 {dimension_numbers = #tpu.dot_dimension_numbers<[1], [0], [0], [1], [0, 0, 1, 1], [], []>} : vector<8x32xf32>, vector<32x128xf32>, vector<8x128xf32> -> vector<8x128xf32>
    %157 = arith.addf %155, %156 : vector<8x128xf32>
    %158 = arith.negf %157 : vector<8x128xf32>
    %159 = math.exp %158 : vector<8x128xf32>
    %cst_44 = arith.constant 1.000000e+00 : f32
    %160 = vector.broadcast %cst_44 : f32 to vector<8x128xf32>
    %161 = arith.addf %160, %159 : vector<8x128xf32>
    %162 = arith.divf %160, %161 : vector<8x128xf32>
    %163 = math.tanh %157 : vector<8x128xf32>
    %164 = vector.extract_strided_slice %162 {offsets = [0, 0], sizes = [8, 32], strides = [1, 1]} : vector<8x128xf32> to vector<8x32xf32>
    %165 = vector.extract_strided_slice %162 {offsets = [0, 32], sizes = [8, 32], strides = [1, 1]} : vector<8x128xf32> to vector<8x32xf32>
    %166 = vector.extract_strided_slice %163 {offsets = [0, 64], sizes = [8, 32], strides = [1, 1]} : vector<8x128xf32> to vector<8x32xf32>
    %167 = vector.extract_strided_slice %162 {offsets = [0, 96], sizes = [8, 32], strides = [1, 1]} : vector<8x128xf32> to vector<8x32xf32>
    %168 = arith.mulf %165, %147 : vector<8x32xf32>
    %169 = arith.mulf %164, %166 : vector<8x32xf32>
    %170 = arith.addf %168, %169 : vector<8x32xf32>
    %171 = math.tanh %170 : vector<8x32xf32>
    %172 = arith.mulf %167, %171 : vector<8x32xf32>
    %173 = arith.extui %11 : i1 to i32
    %c0_i32_45 = arith.constant 0 : i32
    %174 = arith.cmpi ne, %173, %c0_i32_45 : i32
    scf.if %174 {
      %204 = arith.index_cast %153 : i32 to index
      %c0_57 = arith.constant 0 : index
      %205 = vector.load %arg7[%204, %c0_57] : memref<64x32xf32, #tpu.memory_space<vmem>>, vector<8x32xf32>
      tpu.vector_store %arg7[%204, %c0_57], %172 {strides = array<i32>} : memref<64x32xf32, #tpu.memory_space<vmem>>, vector<8x32xf32>,
    } else {
    }
    %c7_i32 = arith.constant 7 : i32
    %c8_i32_46 = arith.constant 8 : i32
    %175 = arith.muli %c7_i32, %c8_i32_46 : i32
    %176 = tpu.assume_multiple %175, 8 : i32
    %177 = arith.index_cast %176 : i32 to index
    %c0_47 = arith.constant 0 : index
    %178 = vector.load %arg8[%177, %c0_47] : memref<64x128xf32, #tpu.memory_space<vmem>>, vector<8x128xf32>
    %cst_48 = arith.constant dense<0.000000e+00> : vector<8x128xf32>
    %179 = tpu.matmul %172, %1, %cst_48 {dimension_numbers = #tpu.dot_dimension_numbers<[1], [0], [0], [1], [0, 0, 1, 1], [], []>} : vector<8x32xf32>, vector<32x128xf32>, vector<8x128xf32> -> vector<8x128xf32>
    %180 = arith.addf %178, %179 : vector<8x128xf32>
    %181 = arith.negf %180 : vector<8x128xf32>
    %182 = math.exp %181 : vector<8x128xf32>
    %cst_49 = arith.constant 1.000000e+00 : f32
    %183 = vector.broadcast %cst_49 : f32 to vector<8x128xf32>
    %184 = arith.addf %183, %182 : vector<8x128xf32>
    %185 = arith.divf %183, %184 : vector<8x128xf32>
    %186 = math.tanh %180 : vector<8x128xf32>
    %187 = vector.extract_strided_slice %185 {offsets = [0, 0], sizes = [8, 32], strides = [1, 1]} : vector<8x128xf32> to vector<8x32xf32>
    %188 = vector.extract_strided_slice %185 {offsets = [0, 32], sizes = [8, 32], strides = [1, 1]} : vector<8x128xf32> to vector<8x32xf32>
    %189 = vector.extract_strided_slice %186 {offsets = [0, 64], sizes = [8, 32], strides = [1, 1]} : vector<8x128xf32> to vector<8x32xf32>
    %190 = vector.extract_strided_slice %185 {offsets = [0, 96], sizes = [8, 32], strides = [1, 1]} : vector<8x128xf32> to vector<8x32xf32>
    %191 = arith.mulf %188, %170 : vector<8x32xf32>
    %192 = arith.mulf %187, %189 : vector<8x32xf32>
    %193 = arith.addf %191, %192 : vector<8x32xf32>
    %194 = math.tanh %193 : vector<8x32xf32>
    %195 = arith.mulf %190, %194 : vector<8x32xf32>
    %196 = arith.extui %11 : i1 to i32
    %c0_i32_50 = arith.constant 0 : i32
    %197 = arith.cmpi ne, %196, %c0_i32_50 : i32
    scf.if %197 {
      %204 = arith.index_cast %176 : i32 to index
      %c0_57 = arith.constant 0 : index
      %205 = vector.load %arg7[%204, %c0_57] : memref<64x32xf32, #tpu.memory_space<vmem>>, vector<8x32xf32>
      tpu.vector_store %arg7[%204, %c0_57], %195 {strides = array<i32>} : memref<64x32xf32, #tpu.memory_space<vmem>>, vector<8x32xf32>,
    } else {
    }
    %c8_i32_51 = arith.constant 8 : i32
    %c0_52 = arith.constant 0 : index
    %c0_53 = arith.constant 0 : index
    %c0_54 = arith.constant 0 : index
    %198 = vector.load %arg6[%c0_52, %c0_53, %c0_54] : memref<1x8x64xf32, #tpu.memory_space<vmem>>, vector<1x8x32xf32>
    %199 = vector.shape_cast %198 : vector<1x8x32xf32> to vector<8x32xf32>
    %200 = vector.shape_cast %195 : vector<8x32xf32> to vector<1x8x32xf32>
    tpu.vector_store %arg6[%c0_52, %c0_53, %c0_54], %200 {strides = array<i32>} : memref<1x8x64xf32, #tpu.memory_space<vmem>>, vector<1x8x32xf32>,
    %c0_55 = arith.constant 0 : index
    %c0_56 = arith.constant 0 : index
    %c32 = arith.constant 32 : index
    %201 = vector.load %arg6[%c0_55, %c0_56, %c32] : memref<1x8x64xf32, #tpu.memory_space<vmem>>, vector<1x8x32xf32>
    %202 = vector.shape_cast %201 : vector<1x8x32xf32> to vector<8x32xf32>
    %203 = vector.shape_cast %193 : vector<8x32xf32> to vector<1x8x32xf32>
    tpu.vector_store %arg6[%c0_55, %c0_56, %c32], %203 {strides = array<i32>} : memref<1x8x64xf32, #tpu.memory_space<vmem>>, vector<1x8x32xf32>,
    return
  }
  func.func @transform_0(%arg0: i32, %arg1: i32) -> (i32, i32, i32) {
    %c0_i32 = arith.constant 0 : i32
    %c0_i32_0 = arith.constant 0 : i32
    %c0_i32_1 = arith.constant 0 : i32
    return %arg0, %c0_i32, %c0_i32_0 : i32, i32, i32
  }
  func.func @transform_1(%arg0: i32, %arg1: i32) -> (i32, i32, i32) {
    %c0_i32 = arith.constant 0 : i32
    %c0_i32_0 = arith.constant 0 : i32
    %c0_i32_1 = arith.constant 0 : i32
    return %arg1, %c0_i32, %c0_i32_0 : i32, i32, i32
  }
  func.func @transform_2(%arg0: i32, %arg1: i32) -> (i32, i32, i32) {
    %c0_i32 = arith.constant 0 : i32
    %c0_i32_0 = arith.constant 0 : i32
    %c0_i32_1 = arith.constant 0 : i32
    return %arg1, %c0_i32, %c0_i32_0 : i32, i32, i32
  }
  func.func @transform_3(%arg0: i32, %arg1: i32) -> (i32, i32, i32) {
    %c0_i32 = arith.constant 0 : i32
    %c0_i32_0 = arith.constant 0 : i32
    %c0_i32_1 = arith.constant 0 : i32
    return %arg1, %c0_i32, %c0_i32_0 : i32, i32, i32
  }
  func.func @transform_4(%arg0: i32, %arg1: i32) -> (i32, i32, i32) {
    %c0_i32 = arith.constant 0 : i32
    %c0_i32_0 = arith.constant 0 : i32
    return %arg1, %arg0, %c0_i32 : i32, i32, i32
  }
}

</mosaic_0001>

<llo_original>
// kernel: encoder_forward.1
$region0: #{encoder_forward.1}
  #allocation0 [shape = 'u32[]', space=smem, size = 0x4, offset = 0x4, fixed_abs, tag = 'smem constant byte address 0x4 - core index']
  #allocation1 [shape = 'u32[144,128]{1,0:T(1,128)}', space=vmem, size = 0x12000, scoped, tag = 'internal scratch']
  #allocation2 [shape = 'f32[64,32]{1,0:T(8,128)}', space=vmem, size = 0x8000, scoped, tag = 'scratch operand']
  #allocation3 [shape = 'f32[64,128]{1,0:T(8,128)}', space=vmem, size = 0x8000, scoped, tag = 'scratch operand']
  %s0 = inlined_call_operand.vmem [shape: f32[1,64,32], index: 0, kind: input, shape index: {}]
  %s1 = inlined_call_operand.vmem [shape: f32[2,32,128], index: 1, kind: input, shape index: {}]
  %s2 = inlined_call_operand.vmem [shape: f32[2,32,128], index: 2, kind: input, shape index: {}]
  %s3 = inlined_call_operand.vmem [shape: f32[2,1,128], index: 3, kind: input, shape index: {}]
  %s4 = inlined_call_operand.vmem [shape: f32[2,8,64], index: 4, kind: output, shape index: {}]
  %s5 = sld [smem:[#allocation0]]
  $region89: #{encoder_forward.1} parent=0
    _
  %s7 = ssub.s32 1, %s5
  %s8 = scalar_select 0, %s7, %s5
  loop: start=0, step=1, limit=4
  $region2: #{encoder_forward.1} parent=0 // loop_pre_header
    _
  $region3: #{encoder_forward.1} parent=0 // loop_header
    %s10 = sphi 0, %s14
    %p11 = scmp.ge.s32.totalorder %s10, 4
    %s17 = sphi 0, %s29
    %s18 = sphi 0, %s25
    %s19 = sphi 0, %s17
    %s20 = sphi 0, %s18
    %s21 = sphi 0, %s19
    %s22 = sphi 0, %s20
    %s32 = sphi 0, %s34
    %s35 = sphi 0, %s32
    %s36 = sphi 0, %s35
    %s52 = sphi 0, %s36
    %s58 = sphi 0, %s60
    %s61 = sphi 0, %s58
    %s62 = sphi 0, %s61
    %s78 = sphi 0, %s62
    %s84 = sphi 0, %s86
    %s87 = sphi 0, %s84
    %s88 = sphi 0, %s87
    %s104 = sphi 0, %s88
    %s110 = sphi 0, %s112
    %s113 = sphi 0, %s110
    %s114 = sphi 0, %s113
    %s130 = sphi 0, %s114
    %s138 = sphi 0, %s140
    %s141 = sphi 0, %s138
    %s142 = sphi 0, %s141
    %s158 = sphi 0, %s142
  $region4: #{encoder_forward.1} parent=0 // loop_header_branch
    %13 = sbr.rel (%p11) target = $region8
  $region5: #{encoder_forward.1} parent=0 // loop_body
    %s15 = ssub.s32 %s10, 1
    %s16 = ssub.s32 %s10, 2
    %s23 = sadd.s32 1, %s18
    %p24 = scmp.ge.s32.totalorder %s23, 2
    %s25 = scalar_select %p24, 0, %s23
    %s26 = sadd.s32 1, %s17
    %s27 = scalar_select %p24, %s26, %s17
    %p28 = scmp.ge.s32.totalorder %s27, 1
    %s29 = scalar_select %p28, 0, %s27
    %s30 = ssub.s32 %s17, %s29
    %p31 = scmp.eq.s32.totalorder %s30, 0
    %s33 = sadd.s32 %s32, 1
    %s34 = scalar_select %p31, %s32, %s33
    %p37 = pneg %p31
    %p38 = scmp.eq.s32.totalorder %s10, 1
    %p39 = por %p37, %p38
    %p40 = scmp.ne.s32.totalorder %s32, %s35
    %p41 = scmp.eq.s32.totalorder %s10, 0
    %p42 = por %p40, %p41
    %p43 = scmp.ne.s32.totalorder %s32, %s35
    %p44 = scmp.eq.s32.totalorder %s15, 1
    %p45 = por %p43, %p44
    %p46 = scmp.ne.s32.totalorder %s35, %s36
    %p47 = scmp.eq.s32.totalorder %s15, 0
    %p48 = por %p46, %p47
    %p49 = scmp.ne.s32.totalorder %s35, %s36
    %p50 = scmp.eq.s32.totalorder %s16, 1
    %p51 = por %p49, %p50
    %p53 = scmp.ne.s32.totalorder %s36, %s52
    %p54 = scmp.eq.s32.totalorder %s16, 0
    %p55 = por %p53, %p54
    %s56 = ssub.s32 %s18, %s25
    %p57 = scmp.eq.s32.totalorder %s56, 0
    %s59 = sadd.s32 %s58, 1
    %s60 = scalar_select %p57, %s58, %s59
    %p63 = pneg %p57
    %p64 = scmp.eq.s32.totalorder %s10, 1
    %p65 = por %p63, %p64
    %p66 = scmp.ne.s32.totalorder %s58, %s61
    %p67 = scmp.eq.s32.totalorder %s10, 0
    %p68 = por %p66, %p67
    %p69 = scmp.ne.s32.totalorder %s58, %s61
    %p70 = scmp.eq.s32.totalorder %s15, 1
    %p71 = por %p69, %p70
    %p72 = scmp.ne.s32.totalorder %s61, %s62
    %p73 = scmp.eq.s32.totalorder %s15, 0
    %p74 = por %p72, %p73
    %p75 = scmp.ne.s32.totalorder %s61, %s62
    %p76 = scmp.eq.s32.totalorder %s16, 1
    %p77 = por %p75, %p76
    %p79 = scmp.ne.s32.totalorder %s62, %s78
    %p80 = scmp.eq.s32.totalorder %s16, 0
    %p81 = por %p79, %p80
    %s82 = ssub.s32 %s18, %s25
    %p83 = scmp.eq.s32.totalorder %s82, 0
    %s85 = sadd.s32 %s84, 1
    %s86 = scalar_select %p83, %s84, %s85
    %p89 = pneg %p83
    %p90 = scmp.eq.s32.totalorder %s10, 1
    %p91 = por %p89, %p90
    %p92 = scmp.ne.s32.totalorder %s84, %s87
    %p93 = scmp.eq.s32.totalorder %s10, 0
    %p94 = por %p92, %p93
    %p95 = scmp.ne.s32.totalorder %s84, %s87
    %p96 = scmp.eq.s32.totalorder %s15, 1
    %p97 = por %p95, %p96
    %p98 = scmp.ne.s32.totalorder %s87, %s88
    %p99 = scmp.eq.s32.totalorder %s15, 0
    %p100 = por %p98, %p99
    %p101 = scmp.ne.s32.totalorder %s87, %s88
    %p102 = scmp.eq.s32.totalorder %s16, 1
    %p103 = por %p101, %p102
    %p105 = scmp.ne.s32.totalorder %s88, %s104
    %p106 = scmp.eq.s32.totalorder %s16, 0
    %p107 = por %p105, %p106
    %s108 = ssub.s32 %s18, %s25
    %p109 = scmp.eq.s32.totalorder %s108, 0
    %s111 = sadd.s32 %s110, 1
    %s112 = scalar_select %p109, %s110, %s111
    %p115 = pneg %p109
    %p116 = scmp.eq.s32.totalorder %s10, 1
    %p117 = por %p115, %p116
    %p118 = scmp.ne.s32.totalorder %s110, %s113
    %p119 = scmp.eq.s32.totalorder %s10, 0
    %p120 = por %p118, %p119
    %p121 = scmp.ne.s32.totalorder %s110, %s113
    %p122 = scmp.eq.s32.totalorder %s15, 1
    %p123 = por %p121, %p122
    %p124 = scmp.ne.s32.totalorder %s113, %s114
    %p125 = scmp.eq.s32.totalorder %s15, 0
    %p126 = por %p124, %p125
    %p127 = scmp.ne.s32.totalorder %s113, %s114
    %p128 = scmp.eq.s32.totalorder %s16, 1
    %p129 = por %p127, %p128
    %p131 = scmp.ne.s32.totalorder %s114, %s130
    %p132 = scmp.eq.s32.totalorder %s16, 0
    %p133 = por %p131, %p132
    %s134 = ssub.s32 %s18, %s25
    %s135 = ssub.s32 %s17, %s29
    %s136 = sor.u32 %s134, %s135
    %p137 = scmp.eq.s32.totalorder %s136, 0
    %s139 = sadd.s32 %s138, 1
    %s140 = scalar_select %p137, %s138, %s139
    %p143 = pneg %p137
    %p144 = scmp.eq.s32.totalorder %s10, 1
    %p145 = por %p143, %p144
    %p146 = scmp.ne.s32.totalorder %s138, %s141
    %p147 = scmp.eq.s32.totalorder %s10, 0
    %p148 = por %p146, %p147
    %p149 = scmp.ne.s32.totalorder %s138, %s141
    %p150 = scmp.eq.s32.totalorder %s15, 1
    %p151 = por %p149, %p150
    %p152 = scmp.ne.s32.totalorder %s141, %s142
    %p153 = scmp.eq.s32.totalorder %s15, 0
    %p154 = por %p152, %p153
    %p155 = scmp.ne.s32.totalorder %s141, %s142
    %p156 = scmp.eq.s32.totalorder %s16, 1
    %p157 = por %p155, %p156
    %p159 = scmp.ne.s32.totalorder %s142, %s158
    %p160 = scmp.eq.s32.totalorder %s16, 0
    %p161 = por %p159, %p160
    %p162 = scmp.le.s32.totalorder 1, %s10
    %p163 = scmp.lt.s32.totalorder %s10, 3
    %p164 = pnand %p162, %p163
    %p165 = pneg %p164
    // Predicated region
    $region9: #{encoder_forward.1} parent=5 // pred_check
      _
    $region10: #{encoder_forward.1} parent=5 // pred_check_branch
      %167 = sbr.rel (%p164) target = $region12
    $region11: #{encoder_forward.1} parent=5 // pred_region
      %s168 = ssub.s32 %s10, 1
      // Predicated region
      $region13: #{encoder_forward.1} parent=11 // pred_check
        %p169 = pneg %p48
      $region14: #{encoder_forward.1} parent=11 // pred_check_branch
        %171 = sbr.rel (%p169) target = $region16
      $region15: #{encoder_forward.1} parent=11 // pred_region
        %p172 = scmp.lt.s32.totalorder %s19, 0
        %s173 = scalar_select %p172, %s19, 0
        %s174 = smul.addr %s173, 8
        %s175 = smul.addr %s174, 8
        %s176 = scalar_lea.vmem %s0, %s175
      $region16: #{encoder_forward.1} parent=11 // pred_fallthru
        _
    $region12: #{encoder_forward.1} parent=5 // pred_fallthru
      _
    %p177 = scmp.lt.s32.totalorder %s10, 2
    // Predicated region
    $region17: #{encoder_forward.1} parent=5 // pred_check
      %p178 = pneg %p177
    $region18: #{encoder_forward.1} parent=5 // pred_check_branch
      %180 = sbr.rel (%p178) target = $region20
    $region19: #{encoder_forward.1} parent=5 // pred_region
      // Predicated region
      $region21: #{encoder_forward.1} parent=19 // pred_check
        %p181 = pneg %p68
      $region22: #{encoder_forward.1} parent=19 // pred_check_branch
        %183 = sbr.rel (%p181) target = $region24
      $region23: #{encoder_forward.1} parent=19 // pred_region
        %p184 = scmp.lt.s32.totalorder %s18, 1
        %s185 = scalar_select %p184, %s18, 1
        %s186 = smul.addr %s185, 4
        %s187 = smul.addr %s186, 8
        %s188 = scalar_lea.vmem %s1, %s187
      $region24: #{encoder_forward.1} parent=19 // pred_fallthru
        _
      // Predicated region
      $region25: #{encoder_forward.1} parent=19 // pred_check
        %p189 = pneg %p94
      $region26: #{encoder_forward.1} parent=19 // pred_check_branch
        %191 = sbr.rel (%p189) target = $region28
      $region27: #{encoder_forward.1} parent=19 // pred_region
        %p192 = scmp.lt.s32.totalorder %s18, 1
        %s193 = scalar_select %p192, %s18, 1
        %s194 = smul.addr %s193, 4
        %s195 = smul.addr %s194, 8
        %s196 = scalar_lea.vmem %s2, %s195
      $region28: #{encoder_forward.1} parent=19 // pred_fallthru
        _
      // Predicated region
      $region29: #{encoder_forward.1} parent=19 // pred_check
        %p197 = pneg %p120
      $region30: #{encoder_forward.1} parent=19 // pred_check_branch
        %199 = sbr.rel (%p197) target = $region32
      $region31: #{encoder_forward.1} parent=19 // pred_region
        %p200 = scmp.lt.s32.totalorder %s18, 1
        %s201 = scalar_select %p200, %s18, 1
        %s202 = scalar_lea.vmem %s3, %s201
      $region32: #{encoder_forward.1} parent=19 // pred_fallthru
        _
    $region20: #{encoder_forward.1} parent=5 // pred_fallthru
      _
    %p203 = scmp.le.s32.totalorder 1, %s10
    %p204 = scmp.lt.s32.totalorder %s10, 3
    %p205 = pnand %p203, %p204
    %p206 = pneg %p205
    // Predicated region
    $region33: #{encoder_forward.1} parent=5 // pred_check
      _
    $region34: #{encoder_forward.1} parent=5 // pred_check_branch
      %208 = sbr.rel (%p205) target = $region36
    $region35: #{encoder_forward.1} parent=5 // pred_region
      %s209 = ssub.s32 %s10, 1
      %p210 = scmp.lt.s32.totalorder %s19, 0
      %s211 = scalar_select %p210, %s19, 0
      %s212 = smul.addr %s211, 8
      %s213 = smul.addr %s212, 8
      %s214 = scalar_lea.vmem %s0, %s213
      %p215 = pneg %p48
      %p216 = pneg %p45
      %p217 = scmp.lt.s32.totalorder %s20, 1
      %s218 = scalar_select %p217, %s20, 1
      %s219 = smul.addr %s218, 4
      %s220 = smul.addr %s219, 8
      %s221 = scalar_lea.vmem %s1, %s220
      %p222 = pneg %p74
      %p223 = pneg %p71
      %p224 = scmp.lt.s32.totalorder %s20, 1
      %s225 = scalar_select %p224, %s20, 1
      %s226 = smul.addr %s225, 4
      %s227 = smul.addr %s226, 8
      %s228 = scalar_lea.vmem %s2, %s227
      %p229 = pneg %p100
      %p230 = pneg %p97
      %p231 = scmp.lt.s32.totalorder %s20, 1
      %s232 = scalar_select %p231, %s20, 1
      %s233 = scalar_lea.vmem %s3, %s232
      %p234 = pneg %p126
      %p235 = pneg %p123
      %p236 = pneg %p154
      %p237 = pneg %p151
      %p238 = scmp.lt.s32.totalorder %s20, 1
      %s239 = scalar_select %p238, %s20, 1
      %p240 = scmp.lt.s32.totalorder %s19, 0
      %s241 = scalar_select %p240, %s19, 0
      %s242 = sadd.s32 %s241, %s239
      %s243 = smul.addr %s242, 8
      %s244 = scalar_lea.vmem %s4, %s243
      %p245 = scmp.lt.s32.totalorder %s19, 0
      %s246 = scalar_select %p245, %s19, 0
      %s247 = smul.addr %s246, 8
      %s248 = smul.addr %s247, 8
      %s249 = scalar_lea.vmem %s0, %s248
      %p250 = scmp.lt.s32.totalorder %s20, 1
      %s251 = scalar_select %p250, %s20, 1
      %s252 = smul.addr %s251, 4
      %s253 = smul.addr %s252, 8
      %s254 = scalar_lea.vmem %s1, %s253
      %p255 = scmp.lt.s32.totalorder %s20, 1
      %s256 = scalar_select %p255, %s20, 1
      %s257 = smul.addr %s256, 4
      %s258 = smul.addr %s257, 8
      %s259 = scalar_lea.vmem %s2, %s258
      %p260 = scmp.lt.s32.totalorder %s20, 1
      %s261 = scalar_select %p260, %s20, 1
      %s262 = scalar_lea.vmem %s3, %s261
      %p263 = scmp.lt.s32.totalorder %s20, 1
      %s264 = scalar_select %p263, %s20, 1
      %p265 = scmp.lt.s32.totalorder %s19, 0
      %s266 = scalar_select %p265, %s19, 0
      %s267 = sadd.s32 %s266, %s264
      %s268 = smul.addr %s267, 8
      %s269 = scalar_lea.vmem %s4, %s268
      %v270 = vld [vmem:[%s259] sm:$0xff]
      %v271 = vld [vmem:[%s259 + $0x8] sm:$0xff]
      %v272 = vld [vmem:[%s259 + $0x10] sm:$0xff]
      %v273 = vld [vmem:[%s259 + $0x18] sm:$0xff]
      %v274 = vld [vmem:[%s262] sm:$0x1]
      %p275 = scmp.eq.s32.totalorder %s20, 0
      // Predicated region
      $region37: #{encoder_forward.1} parent=35 // pred_check
        %p276 = pneg %p275
      $region38: #{encoder_forward.1} parent=35 // pred_check_branch
        %278 = sbr.rel (%p276) target = $region40
      $region39: #{encoder_forward.1} parent=35 // pred_region
        %v279 = vld [vmem:[%s249] sm:$0xff]
        %v280 = vld [vmem:[%s249 + $0x8] sm:$0xff]
        %v281 = vld [vmem:[%s249 + $0x10] sm:$0xff]
        %v282 = vld [vmem:[%s249 + $0x18] sm:$0xff]
        %v283 = vld [vmem:[%s249 + $0x20] sm:$0xff]
        %v284 = vld [vmem:[%s249 + $0x28] sm:$0xff]
        %v285 = vld [vmem:[%s249 + $0x30] sm:$0xff]
        %v286 = vld [vmem:[%s249 + $0x38] sm:$0xff]
        %v287 = vld [vmem:[%s254] sm:$0xff]
        %v288 = vld [vmem:[%s254 + $0x8] sm:$0xff]
        %v289 = vld [vmem:[%s254 + $0x10] sm:$0xff]
        %v290 = vld [vmem:[%s254 + $0x18] sm:$0xff]
        %v292 = vlaneseq
        %v293 = vshrl.u32 %v292, 7
        %v294 = vsub.s32 0, %v293
        %v295 = vrot.slane %v274, %v294
        %vm297 = vcmask 261120
        %v299 = vsel %vm297, %v279, 0
        %v302 = vsel %vm297, %v280, 0
        %v305 = vsel %vm297, %v281, 0
        %v308 = vsel %vm297, %v282, 0
        %v311 = vsel %vm297, %v283, 0
        %v314 = vsel %vm297, %v284, 0
        %v317 = vsel %vm297, %v285, 0
        %v320 = vsel %vm297, %v286, 0
        %322 = vmatprep.subr.mxu0 0.0
        %323 = vmatpush1.msra.mxu0 %v287
        %324 = vmatprep.subr.mxu0 0.0
        %325 = vmatpush1.msra.mxu0 %v288
        %326 = vmatprep.subr.mxu0 0.0
        %327 = vmatpush1.msra.mxu0 %v289
        %328 = vmatprep.subr.mxu0 0.0
        %329 = vmatpush1.msra.mxu0 %v290
        %330 = vmatprep.subr.mxu0 0.0
        %331 = vmatpush1.msra.mxu0 0.0
        %332 = vmatprep.subr.mxu0 0.0
        %333 = vmatpush1.msra.mxu0 0.0
        %334 = vmatprep.subr.mxu0 0.0
        %335 = vmatpush1.msra.mxu0 0.0
        %336 = vmatprep.subr.mxu0 0.0
        %337 = vmatpush1.msra.mxu0 0.0
        %338 = vmatprep.subr.mxu0 0.0
        %339 = vmatpush1.msra.mxu0 0.0
        %340 = vmatprep.subr.mxu0 0.0
        %341 = vmatpush1.msra.mxu0 0.0
        %342 = vmatprep.subr.mxu0 0.0
        %343 = vmatpush1.msra.mxu0 0.0
        %344 = vmatprep.subr.mxu0 0.0
        %345 = vmatpush1.msra.mxu0 0.0
        %346 = vmatprep.subr.mxu0 0.0
        %347 = vmatpush1.msra.mxu0 0.0
        %348 = vmatprep.subr.mxu0 0.0
        %349 = vmatpush1.msra.mxu0 0.0
        %350 = vmatprep.subr.mxu0 0.0
        %351 = vmatpush1.msra.mxu0 0.0
        %352 = vmatprep.subr.mxu0 0.0
        %353 = vmatpush1.msra.mxu0 0.0
        %354 = vmatprep.subr.mxu0 0.0
        %355 = vmatpush1.msra.mxu0 0.0
        %356 = vmatprep.subr.mxu0 0.0
        %357 = vmatpush1.msra.mxu0 0.0
        %358 = vmatprep.subr.mxu0 0.0
        %359 = vmatpush1.msra.mxu0 0.0
        %360 = vmatprep.subr.mxu0 0.0
        %361 = vmatpush1.msra.mxu0 0.0
        %362 = vmatprep.subr.mxu0 0.0
        %363 = vmatpush1.msra.mxu0 0.0
        %364 = vmatprep.subr.mxu0 0.0
        %365 = vmatpush1.msra.mxu0 0.0
        %366 = vmatprep.subr.mxu0 0.0
        %367 = vmatpush1.msra.mxu0 0.0
        %368 = vmatprep.subr.mxu0 0.0
        %369 = vmatpush1.msra.mxu0 0.0
        %370 = vmatprep.subr.mxu0 0.0
        %371 = vmatpush1.msra.mxu0 0.0
        %372 = vmatprep.subr.mxu0 0.0
        %373 = vmatpush1.msra.mxu0 0.0
        %374 = vmatprep.subr.mxu0 0.0
        %375 = vmatpush1.msra.mxu0 0.0
        %376 = vmatprep.subr.mxu0 0.0
        %377 = vmatpush1.msra.mxu0 0.0
        %378 = vmatprep.subr.mxu0 0.0
        %379 = vmatpush1.msra.mxu0 0.0
        %380 = vmatprep.subr.mxu0 0.0
        %381 = vmatpush1.msra.mxu0 0.0
        %382 = vmatprep.subr.mxu0 0.0
        %383 = vmatpush1.msra.mxu0 0.0
        %384 = vmatprep.subr.mxu0 0.0
        %385 = vmatpush1.msra.mxu0 0.0
        %386 = vmatprep.mubr.f32.mxu0 0.0
        %387 = vmatmul.mubr.f32.gmra.mrb[0].mxu0 %v299
        %v388 = vpop.f32.mrb[0].mxu0
        %v389 = vadd.f32 %v295, %v388
        %v390 = vpop.f32.mrb[0].mxu0
        %391 = vmatprep.mubr.f32.mxu0 0.0
        %392 = vmatmul.mubr.f32.gmra.mrb[0].mxu0 %v302
        %v393 = vpop.f32.mrb[0].mxu0
        %v394 = vadd.f32 %v295, %v393
        %v395 = vpop.f32.mrb[0].mxu0
        %396 = vmatprep.mubr.f32.mxu0 0.0
        %397 = vmatmul.mubr.f32.gmra.mrb[0].mxu0 %v305
        %v398 = vpop.f32.mrb[0].mxu0
        %v399 = vadd.f32 %v295, %v398
        %v400 = vpop.f32.mrb[0].mxu0
        %401 = vmatprep.mubr.f32.mxu0 0.0
        %402 = vmatmul.mubr.f32.gmra.mrb[0].mxu0 %v308
        %v403 = vpop.f32.mrb[0].mxu0
        %v404 = vadd.f32 %v295, %v403
        %v405 = vpop.f32.mrb[0].mxu0
        %406 = vmatprep.mubr.f32.mxu0 0.0
        %407 = vmatmul.mubr.f32.gmra.mrb[0].mxu0 %v311
        %v408 = vpop.f32.mrb[0].mxu0
        %v409 = vadd.f32 %v295, %v408
        %v410 = vpop.f32.mrb[0].mxu0
        %411 = vmatprep.mubr.f32.mxu0 0.0
        %412 = vmatmul.mubr.f32.gmra.mrb[0].mxu0 %v314
        %v413 = vpop.f32.mrb[0].mxu0
        %v414 = vadd.f32 %v295, %v413
        %v415 = vpop.f32.mrb[0].mxu0
        %416 = vmatprep.mubr.f32.mxu0 0.0
        %417 = vmatmul.mubr.f32.gmra.mrb[0].mxu0 %v317
        %v418 = vpop.f32.mrb[0].mxu0
        %v419 = vadd.f32 %v295, %v418
        %v420 = vpop.f32.mrb[0].mxu0
        %421 = vmatprep.mubr.f32.mxu0 0.0
        %422 = vmatmul.mubr.f32.gmra.mrb[0].mxu0 %v320
        %v423 = vpop.f32.mrb[0].mxu0
        %v424 = vadd.f32 %v295, %v423
        %v425 = vpop.f32.mrb[0].mxu0
        %426 = vdwg.mxu0
        %427 = vst [vmem:[#allocation3] sm:$0xff] %v389
        %428 = vst [vmem:[#allocation3 + $0x8] sm:$0xff] %v394
        %429 = vst [vmem:[#allocation3 + $0x10] sm:$0xff] %v399
        %430 = vst [vmem:[#allocation3 + $0x18] sm:$0xff] %v404
        %431 = vst [vmem:[#allocation3 + $0x20] sm:$0xff] %v409
        %432 = vst [vmem:[#allocation3 + $0x28] sm:$0xff] %v414
        %433 = vst [vmem:[#allocation3 + $0x30] sm:$0xff] %v419
        %434 = vst [vmem:[#allocation3 + $0x38] sm:$0xff] %v424
      $region40: #{encoder_forward.1} parent=35 // pred_fallthru
        _
      %p435 = scmp.gt.s32.totalorder %s20, 0
      // Predicated region
      $region41: #{encoder_forward.1} parent=35 // pred_check
        %p436 = pneg %p435
      $region42: #{encoder_forward.1} parent=35 // pred_check_branch
        %438 = sbr.rel (%p436) target = $region44
      $region43: #{encoder_forward.1} parent=35 // pred_region
        %v439 = vld [vmem:[#allocation2] sm:$0xff]
        %v440 = vld [vmem:[#allocation2 + $0x8] sm:$0xff]
        %v441 = vld [vmem:[#allocation2 + $0x10] sm:$0xff]
        %v442 = vld [vmem:[#allocation2 + $0x18] sm:$0xff]
        %v443 = vld [vmem:[#allocation2 + $0x20] sm:$0xff]
        %v444 = vld [vmem:[#allocation2 + $0x28] sm:$0xff]
        %v445 = vld [vmem:[#allocation2 + $0x30] sm:$0xff]
        %v446 = vld [vmem:[#allocation2 + $0x38] sm:$0xff]
        %v447 = vld [vmem:[%s254] sm:$0xff]
        %v448 = vld [vmem:[%s254 + $0x8] sm:$0xff]
        %v449 = vld [vmem:[%s254 + $0x10] sm:$0xff]
        %v450 = vld [vmem:[%s254 + $0x18] sm:$0xff]
        %v452 = vlaneseq
        %v453 = vshrl.u32 %v452, 7
        %v454 = vsub.s32 0, %v453
        %v455 = vrot.slane %v274, %v454
        %vm457 = vcmask 261120
        %v459 = vsel %vm457, %v439, 0
        %v462 = vsel %vm457, %v440, 0
        %v465 = vsel %vm457, %v441, 0
        %v468 = vsel %vm457, %v442, 0
        %v471 = vsel %vm457, %v443, 0
        %v474 = vsel %vm457, %v444, 0
        %v477 = vsel %vm457, %v445, 0
        %v480 = vsel %vm457, %v446, 0
        %482 = vmatprep.subr.mxu0 0.0
        %483 = vmatpush1.msra.mxu0 %v447
        %484 = vmatprep.subr.mxu0 0.0
        %485 = vmatpush1.msra.mxu0 %v448
        %486 = vmatprep.subr.mxu0 0.0
        %487 = vmatpush1.msra.mxu0 %v449
        %488 = vmatprep.subr.mxu0 0.0
        %489 = vmatpush1.msra.mxu0 %v450
        %490 = vmatprep.subr.mxu0 0.0
        %491 = vmatpush1.msra.mxu0 0.0
        %492 = vmatprep.subr.mxu0 0.0
        %493 = vmatpush1.msra.mxu0 0.0
        %494 = vmatprep.subr.mxu0 0.0
        %495 = vmatpush1.msra.mxu0 0.0
        %496 = vmatprep.subr.mxu0 0.0
        %497 = vmatpush1.msra.mxu0 0.0
        %498 = vmatprep.subr.mxu0 0.0
        %499 = vmatpush1.msra.mxu0 0.0
        %500 = vmatprep.subr.mxu0 0.0
        %501 = vmatpush1.msra.mxu0 0.0
        %502 = vmatprep.subr.mxu0 0.0
        %503 = vmatpush1.msra.mxu0 0.0
        %504 = vmatprep.subr.mxu0 0.0
        %505 = vmatpush1.msra.mxu0 0.0
        %506 = vmatprep.subr.mxu0 0.0
        %507 = vmatpush1.msra.mxu0 0.0
        %508 = vmatprep.subr.mxu0 0.0
        %509 = vmatpush1.msra.mxu0 0.0
        %510 = vmatprep.subr.mxu0 0.0
        %511 = vmatpush1.msra.mxu0 0.0
        %512 = vmatprep.subr.mxu0 0.0
        %513 = vmatpush1.msra.mxu0 0.0
        %514 = vmatprep.subr.mxu0 0.0
        %515 = vmatpush1.msra.mxu0 0.0
        %516 = vmatprep.subr.mxu0 0.0
        %517 = vmatpush1.msra.mxu0 0.0
        %518 = vmatprep.subr.mxu0 0.0
        %519 = vmatpush1.msra.mxu0 0.0
        %520 = vmatprep.subr.mxu0 0.0
        %521 = vmatpush1.msra.mxu0 0.0
        %522 = vmatprep.subr.mxu0 0.0
        %523 = vmatpush1.msra.mxu0 0.0
        %524 = vmatprep.subr.mxu0 0.0
        %525 = vmatpush1.msra.mxu0 0.0
        %526 = vmatprep.subr.mxu0 0.0
        %527 = vmatpush1.msra.mxu0 0.0
        %528 = vmatprep.subr.mxu0 0.0
        %529 = vmatpush1.msra.mxu0 0.0
        %530 = vmatprep.subr.mxu0 0.0
        %531 = vmatpush1.msra.mxu0 0.0
        %532 = vmatprep.subr.mxu0 0.0
        %533 = vmatpush1.msra.mxu0 0.0
        %534 = vmatprep.subr.mxu0 0.0
        %535 = vmatpush1.msra.mxu0 0.0
        %536 = vmatprep.subr.mxu0 0.0
        %537 = vmatpush1.msra.mxu0 0.0
        %538 = vmatprep.subr.mxu0 0.0
        %539 = vmatpush1.msra.mxu0 0.0
        %540 = vmatprep.subr.mxu0 0.0
        %541 = vmatpush1.msra.mxu0 0.0
        %542 = vmatprep.subr.mxu0 0.0
        %543 = vmatpush1.msra.mxu0 0.0
        %544 = vmatprep.subr.mxu0 0.0
        %545 = vmatpush1.msra.mxu0 0.0
        %546 = vmatprep.mubr.f32.mxu0 0.0
        %547 = vmatmul.mubr.f32.gmra.mrb[0].mxu0 %v459
        %v548 = vpop.f32.mrb[0].mxu0
        %v549 = vadd.f32 %v455, %v548
        %v550 = vpop.f32.mrb[0].mxu0
        %551 = vmatprep.mubr.f32.mxu0 0.0
        %552 = vmatmul.mubr.f32.gmra.mrb[0].mxu0 %v462
        %v553 = vpop.f32.mrb[0].mxu0
        %v554 = vadd.f32 %v455, %v553
        %v555 = vpop.f32.mrb[0].mxu0
        %556 = vmatprep.mubr.f32.mxu0 0.0
        %557 = vmatmul.mubr.f32.gmra.mrb[0].mxu0 %v465
        %v558 = vpop.f32.mrb[0].mxu0
        %v559 = vadd.f32 %v455, %v558
        %v560 = vpop.f32.mrb[0].mxu0
        %561 = vmatprep.mubr.f32.mxu0 0.0
        %562 = vmatmul.mubr.f32.gmra.mrb[0].mxu0 %v468
        %v563 = vpop.f32.mrb[0].mxu0
        %v564 = vadd.f32 %v455, %v563
        %v565 = vpop.f32.mrb[0].mxu0
        %566 = vmatprep.mubr.f32.mxu0 0.0
        %567 = vmatmul.mubr.f32.gmra.mrb[0].mxu0 %v471
        %v568 = vpop.f32.mrb[0].mxu0
        %v569 = vadd.f32 %v455, %v568
        %v570 = vpop.f32.mrb[0].mxu0
        %571 = vmatprep.mubr.f32.mxu0 0.0
        %572 = vmatmul.mubr.f32.gmra.mrb[0].mxu0 %v474
        %v573 = vpop.f32.mrb[0].mxu0
        %v574 = vadd.f32 %v455, %v573
        %v575 = vpop.f32.mrb[0].mxu0
        %576 = vmatprep.mubr.f32.mxu0 0.0
        %577 = vmatmul.mubr.f32.gmra.mrb[0].mxu0 %v477
        %v578 = vpop.f32.mrb[0].mxu0
        %v579 = vadd.f32 %v455, %v578
        %v580 = vpop.f32.mrb[0].mxu0
        %581 = vmatprep.mubr.f32.mxu0 0.0
        %582 = vmatmul.mubr.f32.gmra.mrb[0].mxu0 %v480
        %v583 = vpop.f32.mrb[0].mxu0
        %v584 = vadd.f32 %v455, %v583
        %v585 = vpop.f32.mrb[0].mxu0
        %586 = vdwg.mxu0
        %587 = vst [vmem:[#allocation3] sm:$0xff] %v549
        %588 = vst [vmem:[#allocation3 + $0x8] sm:$0xff] %v554
        %589 = vst [vmem:[#allocation3 + $0x10] sm:$0xff] %v559
        %590 = vst [vmem:[#allocation3 + $0x18] sm:$0xff] %v564
        %591 = vst [vmem:[#allocation3 + $0x20] sm:$0xff] %v569
        %592 = vst [vmem:[#allocation3 + $0x28] sm:$0xff] %v574
        %593 = vst [vmem:[#allocation3 + $0x30] sm:$0xff] %v579
        %594 = vst [vmem:[#allocation3 + $0x38] sm:$0xff] %v584
      $region44: #{encoder_forward.1} parent=35 // pred_fallthru
        _
      %s595 = sadd.s32 %s20, 1
      %p596 = scmp.lt.s32.totalorder %s595, 2
      %v597 = vld [vmem:[#allocation3] sm:$0xff]
      %vm598 = vcmask 261120
      %v600 = vsel %vm598, 0.0, 0
      %602 = vmatprep.subr.mxu0 0.0
      %603 = vmatpush1.msra.mxu0 %v270
      %604 = vmatprep.subr.mxu0 0.0
      %605 = vmatpush1.msra.mxu0 %v271
      %606 = vmatprep.subr.mxu0 0.0
      %607 = vmatpush1.msra.mxu0 %v272
      %608 = vmatprep.subr.mxu0 0.0
      %609 = vmatpush1.msra.mxu0 %v273
      %610 = vmatprep.subr.mxu0 0.0
      %611 = vmatpush1.msra.mxu0 0.0
      %612 = vmatprep.subr.mxu0 0.0
      %613 = vmatpush1.msra.mxu0 0.0
      %614 = vmatprep.subr.mxu0 0.0
      %615 = vmatpush1.msra.mxu0 0.0
      %616 = vmatprep.subr.mxu0 0.0
      %617 = vmatpush1.msra.mxu0 0.0
      %618 = vmatprep.subr.mxu0 0.0
      %619 = vmatpush1.msra.mxu0 0.0
      %620 = vmatprep.subr.mxu0 0.0
      %621 = vmatpush1.msra.mxu0 0.0
      %622 = vmatprep.subr.mxu0 0.0
      %623 = vmatpush1.msra.mxu0 0.0
      %624 = vmatprep.subr.mxu0 0.0
      %625 = vmatpush1.msra.mxu0 0.0
      %626 = vmatprep.subr.mxu0 0.0
      %627 = vmatpush1.msra.mxu0 0.0
      %628 = vmatprep.subr.mxu0 0.0
      %629 = vmatpush1.msra.mxu0 0.0
      %630 = vmatprep.subr.mxu0 0.0
      %631 = vmatpush1.msra.mxu0 0.0
      %632 = vmatprep.subr.mxu0 0.0
      %633 = vmatpush1.msra.mxu0 0.0
      %634 = vmatprep.subr.mxu0 0.0
      %635 = vmatpush1.msra.mxu0 0.0
      %636 = vmatprep.subr.mxu0 0.0
      %637 = vmatpush1.msra.mxu0 0.0
      %638 = vmatprep.subr.mxu0 0.0
      %639 = vmatpush1.msra.mxu0 0.0
      %640 = vmatprep.subr.mxu0 0.0
      %641 = vmatpush1.msra.mxu0 0.0
      %642 = vmatprep.subr.mxu0 0.0
      %643 = vmatpush1.msra.mxu0 0.0
      %644 = vmatprep.subr.mxu0 0.0
      %645 = vmatpush1.msra.mxu0 0.0
      %646 = vmatprep.subr.mxu0 0.0
      %647 = vmatpush1.msra.mxu0 0.0
      %648 = vmatprep.subr.mxu0 0.0
      %649 = vmatpush1.msra.mxu0 0.0
      %650 = vmatprep.subr.mxu0 0.0
      %651 = vmatpush1.msra.mxu0 0.0
      %652 = vmatprep.subr.mxu0 0.0
      %653 = vmatpush1.msra.mxu0 0.0
      %654 = vmatprep.subr.mxu0 0.0
      %655 = vmatpush1.msra.mxu0 0.0
      %656 = vmatprep.subr.mxu0 0.0
      %657 = vmatpush1.msra.mxu0 0.0
      %658 = vmatprep.subr.mxu0 0.0
      %659 = vmatpush1.msra.mxu0 0.0
      %660 = vmatprep.subr.mxu0 0.0
      %661 = vmatpush1.msra.mxu0 0.0
      %662 = vmatprep.subr.mxu0 0.0
      %663 = vmatpush1.msra.mxu0 0.0
      %664 = vmatprep.subr.mxu0 0.0
      %665 = vmatpush1.msra.mxu0 0.0
      %666 = vmatprep.mubr.f32.mxu0 0.0
      %667 = vmatmul.mubr.f32.gmra.mrb[0].mxu0 %v600
      %v668 = vpop.f32.mrb[0].mxu0
      %v669 = vadd.f32 0.0, %v668
      %v670 = vpop.f32.mrb[0].mxu0
      %671 = vdwg.mxu0
      %v672 = vadd.f32 %v597, %v669
      %v673 = vxor.u32 %v672, 2147483648
      %v674 = vmul.f32 %v673, 1.442695
      %v675 = vpow.pop %v674
      %v676 = vadd.f32 %v675, 1.0
      %v677 = vrcp.pop %v676
      %v678 = vmul.f32 1.0, %v677
      %v679 = vtanh.pop %v672
      %v680 = vmul.f32 %v678, 0.0
      %682 = vrot.lane.b32.xlu0 %v679, 64
      %v683 = vpop.permute.xlu0 %682
      %v685 = vmul.f32 %v678, %v683
      %687 = vrot.lane.b32.xlu0 %v685, 32
      %v688 = vpop.permute.xlu0 %687
      %v690 = vadd.f32 %v680, %v688
      %v691 = vtanh.pop %v690
      %693 = vrot.lane.b32.xlu0 %v691, 64
      %v694 = vpop.permute.xlu0 %693
      %v696 = vmul.f32 %v678, %v694
      // Predicated region
      $region45: #{encoder_forward.1} parent=35 // pred_check
        %p697 = pneg %p596
      $region46: #{encoder_forward.1} parent=35 // pred_check_branch
        %699 = sbr.rel (%p697) target = $region48
      $region47: #{encoder_forward.1} parent=35 // pred_region
        %701 = vrot.lane.b32.xlu0 %v696, 32
        %v702 = vpop.permute.xlu0 %701
        %704 = vst.msk [vmem:[#allocation2] sm:$0xff] %vm598, %v702
      $region48: #{encoder_forward.1} parent=35 // pred_fallthru
        _
      %s705 = scalar_lea.vmem [#allocation3], 8
      %v706 = vld [vmem:[%s705] sm:$0xff]
      %708 = vrot.lane.b32.xlu0 %v696, 32
      %v709 = vpop.permute.xlu0 %708
      %v710 = vsel %vm598, %v709, 0
      %712 = vmatprep.subr.mxu0 0.0
      %713 = vmatpush1.msra.mxu0 %v270
      %714 = vmatprep.subr.mxu0 0.0
      %715 = vmatpush1.msra.mxu0 %v271
      %716 = vmatprep.subr.mxu0 0.0
      %717 = vmatpush1.msra.mxu0 %v272
      %718 = vmatprep.subr.mxu0 0.0
      %719 = vmatpush1.msra.mxu0 %v273
      %720 = vmatprep.subr.mxu0 0.0
      %721 = vmatpush1.msra.mxu0 0.0
      %722 = vmatprep.subr.mxu0 0.0
      %723 = vmatpush1.msra.mxu0 0.0
      %724 = vmatprep.subr.mxu0 0.0
      %725 = vmatpush1.msra.mxu0 0.0
      %726 = vmatprep.subr.mxu0 0.0
      %727 = vmatpush1.msra.mxu0 0.0
      %728 = vmatprep.subr.mxu0 0.0
      %729 = vmatpush1.msra.mxu0 0.0
      %730 = vmatprep.subr.mxu0 0.0
      %731 = vmatpush1.msra.mxu0 0.0
      %732 = vmatprep.subr.mxu0 0.0
      %733 = vmatpush1.msra.mxu0 0.0
      %734 = vmatprep.subr.mxu0 0.0
      %735 = vmatpush1.msra.mxu0 0.0
      %736 = vmatprep.subr.mxu0 0.0
      %737 = vmatpush1.msra.mxu0 0.0
      %738 = vmatprep.subr.mxu0 0.0
      %739 = vmatpush1.msra.mxu0 0.0
      %740 = vmatprep.subr.mxu0 0.0
      %741 = vmatpush1.msra.mxu0 0.0
      %742 = vmatprep.subr.mxu0 0.0
      %743 = vmatpush1.msra.mxu0 0.0
      %744 = vmatprep.subr.mxu0 0.0
      %745 = vmatpush1.msra.mxu0 0.0
      %746 = vmatprep.subr.mxu0 0.0
      %747 = vmatpush1.msra.mxu0 0.0
      %748 = vmatprep.subr.mxu0 0.0
      %749 = vmatpush1.msra.mxu0 0.0
      %750 = vmatprep.subr.mxu0 0.0
      %751 = vmatpush1.msra.mxu0 0.0
      %752 = vmatprep.subr.mxu0 0.0
      %753 = vmatpush1.msra.mxu0 0.0
      %754 = vmatprep.subr.mxu0 0.0
      %755 = vmatpush1.msra.mxu0 0.0
      %756 = vmatprep.subr.mxu0 0.0
      %757 = vmatpush1.msra.mxu0 0.0
      %758 = vmatprep.subr.mxu0 0.0
      %759 = vmatpush1.msra.mxu0 0.0
      %760 = vmatprep.subr.mxu0 0.0
      %761 = vmatpush1.msra.mxu0 0.0
      %762 = vmatprep.subr.mxu0 0.0
      %763 = vmatpush1.msra.mxu0 0.0
      %764 = vmatprep.subr.mxu0 0.0
      %765 = vmatpush1.msra.mxu0 0.0
      %766 = vmatprep.subr.mxu0 0.0
      %767 = vmatpush1.msra.mxu0 0.0
      %768 = vmatprep.subr.mxu0 0.0
      %769 = vmatpush1.msra.mxu0 0.0
      %770 = vmatprep.subr.mxu0 0.0
      %771 = vmatpush1.msra.mxu0 0.0
      %772 = vmatprep.subr.mxu0 0.0
      %773 = vmatpush1.msra.mxu0 0.0
      %774 = vmatprep.subr.mxu0 0.0
      %775 = vmatpush1.msra.mxu0 0.0
      %776 = vmatprep.mubr.f32.mxu0 0.0
      %777 = vmatmul.mubr.f32.gmra.mrb[0].mxu0 %v710
      %v778 = vpop.f32.mrb[0].mxu0
      %v779 = vadd.f32 0.0, %v778
      %v780 = vpop.f32.mrb[0].mxu0
      %781 = vdwg.mxu0
      %v782 = vadd.f32 %v706, %v779
      %v783 = vxor.u32 %v782, 2147483648
      %v784 = vmul.f32 %v783, 1.442695
      %v785 = vpow.pop %v784
      %v786 = vadd.f32 %v785, 1.0
      %v787 = vrcp.pop %v786
      %v788 = vmul.f32 1.0, %v787
      %v789 = vtanh.pop %v782
      %v790 = vmul.f32 %v788, %v690
      %792 = vrot.lane.b32.xlu0 %v789, 64
      %v793 = vpop.permute.xlu0 %792
      %v795 = vmul.f32 %v788, %v793
      %797 = vrot.lane.b32.xlu0 %v795, 32
      %v798 = vpop.permute.xlu0 %797
      %v800 = vadd.f32 %v790, %v798
      %v801 = vtanh.pop %v800
      %803 = vrot.lane.b32.xlu0 %v801, 64
      %v804 = vpop.permute.xlu0 %803
      %v806 = vmul.f32 %v788, %v804
      // Predicated region
      $region49: #{encoder_forward.1} parent=35 // pred_check
        %p807 = pneg %p596
      $region50: #{encoder_forward.1} parent=35 // pred_check_branch
        %809 = sbr.rel (%p807) target = $region52
      $region51: #{encoder_forward.1} parent=35 // pred_region
        %811 = vrot.lane.b32.xlu0 %v806, 32
        %v812 = vpop.permute.xlu0 %811
        %s814 = scalar_lea.vmem [#allocation2], 8
        %815 = vst.msk [vmem:[%s814] sm:$0xff] %vm598, %v812
      $region52: #{encoder_forward.1} parent=35 // pred_fallthru
        _
      %s816 = scalar_lea.vmem [#allocation3], 16
      %v817 = vld [vmem:[%s816] sm:$0xff]
      %819 = vrot.lane.b32.xlu0 %v806, 32
      %v820 = vpop.permute.xlu0 %819
      %v821 = vsel %vm598, %v820, 0
      %823 = vmatprep.subr.mxu0 0.0
      %824 = vmatpush1.msra.mxu0 %v270
      %825 = vmatprep.subr.mxu0 0.0
      %826 = vmatpush1.msra.mxu0 %v271
      %827 = vmatprep.subr.mxu0 0.0
      %828 = vmatpush1.msra.mxu0 %v272
      %829 = vmatprep.subr.mxu0 0.0
      %830 = vmatpush1.msra.mxu0 %v273
      %831 = vmatprep.subr.mxu0 0.0
      %832 = vmatpush1.msra.mxu0 0.0
      %833 = vmatprep.subr.mxu0 0.0
      %834 = vmatpush1.msra.mxu0 0.0
      %835 = vmatprep.subr.mxu0 0.0
      %836 = vmatpush1.msra.mxu0 0.0
      %837 = vmatprep.subr.mxu0 0.0
      %838 = vmatpush1.msra.mxu0 0.0
      %839 = vmatprep.subr.mxu0 0.0
      %840 = vmatpush1.msra.mxu0 0.0
      %841 = vmatprep.subr.mxu0 0.0
      %842 = vmatpush1.msra.mxu0 0.0
      %843 = vmatprep.subr.mxu0 0.0
      %844 = vmatpush1.msra.mxu0 0.0
      %845 = vmatprep.subr.mxu0 0.0
      %846 = vmatpush1.msra.mxu0 0.0
      %847 = vmatprep.subr.mxu0 0.0
      %848 = vmatpush1.msra.mxu0 0.0
      %849 = vmatprep.subr.mxu0 0.0
      %850 = vmatpush1.msra.mxu0 0.0
      %851 = vmatprep.subr.mxu0 0.0
      %852 = vmatpush1.msra.mxu0 0.0
      %853 = vmatprep.subr.mxu0 0.0
      %854 = vmatpush1.msra.mxu0 0.0
      %855 = vmatprep.subr.mxu0 0.0
      %856 = vmatpush1.msra.mxu0 0.0
      %857 = vmatprep.subr.mxu0 0.0
      %858 = vmatpush1.msra.mxu0 0.0
      %859 = vmatprep.subr.mxu0 0.0
      %860 = vmatpush1.msra.mxu0 0.0
      %861 = vmatprep.subr.mxu0 0.0
      %862 = vmatpush1.msra.mxu0 0.0
      %863 = vmatprep.subr.mxu0 0.0
      %864 = vmatpush1.msra.mxu0 0.0
      %865 = vmatprep.subr.mxu0 0.0
      %866 = vmatpush1.msra.mxu0 0.0
      %867 = vmatprep.subr.mxu0 0.0
      %868 = vmatpush1.msra.mxu0 0.0
      %869 = vmatprep.subr.mxu0 0.0
      %870 = vmatpush1.msra.mxu0 0.0
      %871 = vmatprep.subr.mxu0 0.0
      %872 = vmatpush1.msra.mxu0 0.0
      %873 = vmatprep.subr.mxu0 0.0
      %874 = vmatpush1.msra.mxu0 0.0
      %875 = vmatprep.subr.mxu0 0.0
      %876 = vmatpush1.msra.mxu0 0.0
      %877 = vmatprep.subr.mxu0 0.0
      %878 = vmatpush1.msra.mxu0 0.0
      %879 = vmatprep.subr.mxu0 0.0
      %880 = vmatpush1.msra.mxu0 0.0
      %881 = vmatprep.subr.mxu0 0.0
      %882 = vmatpush1.msra.mxu0 0.0
      %883 = vmatprep.subr.mxu0 0.0
      %884 = vmatpush1.msra.mxu0 0.0
      %885 = vmatprep.subr.mxu0 0.0
      %886 = vmatpush1.msra.mxu0 0.0
      %887 = vmatprep.mubr.f32.mxu0 0.0
      %888 = vmatmul.mubr.f32.gmra.mrb[0].mxu0 %v821
      %v889 = vpop.f32.mrb[0].mxu0
      %v890 = vadd.f32 0.0, %v889
      %v891 = vpop.f32.mrb[0].mxu0
      %892 = vdwg.mxu0
      %v893 = vadd.f32 %v817, %v890
      %v894 = vxor.u32 %v893, 2147483648
      %v895 = vmul.f32 %v894, 1.442695
      %v896 = vpow.pop %v895
      %v897 = vadd.f32 %v896, 1.0
      %v898 = vrcp.pop %v897
      %v899 = vmul.f32 1.0, %v898
      %v900 = vtanh.pop %v893
      %v901 = vmul.f32 %v899, %v800
      %903 = vrot.lane.b32.xlu0 %v900, 64
      %v904 = vpop.permute.xlu0 %903
      %v906 = vmul.f32 %v899, %v904
      %908 = vrot.lane.b32.xlu0 %v906, 32
      %v909 = vpop.permute.xlu0 %908
      %v911 = vadd.f32 %v901, %v909
      %v912 = vtanh.pop %v911
      %914 = vrot.lane.b32.xlu0 %v912, 64
      %v915 = vpop.permute.xlu0 %914
      %v917 = vmul.f32 %v899, %v915
      // Predicated region
      $region53: #{encoder_forward.1} parent=35 // pred_check
        %p918 = pneg %p596
      $region54: #{encoder_forward.1} parent=35 // pred_check_branch
        %920 = sbr.rel (%p918) target = $region56
      $region55: #{encoder_forward.1} parent=35 // pred_region
        %922 = vrot.lane.b32.xlu0 %v917, 32
        %v923 = vpop.permute.xlu0 %922
        %s925 = scalar_lea.vmem [#allocation2], 16
        %926 = vst.msk [vmem:[%s925] sm:$0xff] %vm598, %v923
      $region56: #{encoder_forward.1} parent=35 // pred_fallthru
        _
      %s927 = scalar_lea.vmem [#allocation3], 24
      %v928 = vld [vmem:[%s927] sm:$0xff]
      %930 = vrot.lane.b32.xlu0 %v917, 32
      %v931 = vpop.permute.xlu0 %930
      %v932 = vsel %vm598, %v931, 0
      %934 = vmatprep.subr.mxu0 0.0
      %935 = vmatpush1.msra.mxu0 %v270
      %936 = vmatprep.subr.mxu0 0.0
      %937 = vmatpush1.msra.mxu0 %v271
      %938 = vmatprep.subr.mxu0 0.0
      %939 = vmatpush1.msra.mxu0 %v272
      %940 = vmatprep.subr.mxu0 0.0
      %941 = vmatpush1.msra.mxu0 %v273
      %942 = vmatprep.subr.mxu0 0.0
      %943 = vmatpush1.msra.mxu0 0.0
      %944 = vmatprep.subr.mxu0 0.0
      %945 = vmatpush1.msra.mxu0 0.0
      %946 = vmatprep.subr.mxu0 0.0
      %947 = vmatpush1.msra.mxu0 0.0
      %948 = vmatprep.subr.mxu0 0.0
      %949 = vmatpush1.msra.mxu0 0.0
      %950 = vmatprep.subr.mxu0 0.0
      %951 = vmatpush1.msra.mxu0 0.0
      %952 = vmatprep.subr.mxu0 0.0
      %953 = vmatpush1.msra.mxu0 0.0
      %954 = vmatprep.subr.mxu0 0.0
      %955 = vmatpush1.msra.mxu0 0.0
      %956 = vmatprep.subr.mxu0 0.0
      %957 = vmatpush1.msra.mxu0 0.0
      %958 = vmatprep.subr.mxu0 0.0
      %959 = vmatpush1.msra.mxu0 0.0
      %960 = vmatprep.subr.mxu0 0.0
      %961 = vmatpush1.msra.mxu0 0.0
      %962 = vmatprep.subr.mxu0 0.0
      %963 = vmatpush1.msra.mxu0 0.0
      %964 = vmatprep.subr.mxu0 0.0
      %965 = vmatpush1.msra.mxu0 0.0
      %966 = vmatprep.subr.mxu0 0.0
      %967 = vmatpush1.msra.mxu0 0.0
      %968 = vmatprep.subr.mxu0 0.0
      %969 = vmatpush1.msra.mxu0 0.0
      %970 = vmatprep.subr.mxu0 0.0
      %971 = vmatpush1.msra.mxu0 0.0
      %972 = vmatprep.subr.mxu0 0.0
      %973 = vmatpush1.msra.mxu0 0.0
      %974 = vmatprep.subr.mxu0 0.0
      %975 = vmatpush1.msra.mxu0 0.0
      %976 = vmatprep.subr.mxu0 0.0
      %977 = vmatpush1.msra.mxu0 0.0
      %978 = vmatprep.subr.mxu0 0.0
      %979 = vmatpush1.msra.mxu0 0.0
      %980 = vmatprep.subr.mxu0 0.0
      %981 = vmatpush1.msra.mxu0 0.0
      %982 = vmatprep.subr.mxu0 0.0
      %983 = vmatpush1.msra.mxu0 0.0
      %984 = vmatprep.subr.mxu0 0.0
      %985 = vmatpush1.msra.mxu0 0.0
      %986 = vmatprep.subr.mxu0 0.0
      %987 = vmatpush1.msra.mxu0 0.0
      %988 = vmatprep.subr.mxu0 0.0
      %989 = vmatpush1.msra.mxu0 0.0
      %990 = vmatprep.subr.mxu0 0.0
      %991 = vmatpush1.msra.mxu0 0.0
      %992 = vmatprep.subr.mxu0 0.0
      %993 = vmatpush1.msra.mxu0 0.0
      %994 = vmatprep.subr.mxu0 0.0
      %995 = vmatpush1.msra.mxu0 0.0
      %996 = vmatprep.subr.mxu0 0.0
      %997 = vmatpush1.msra.mxu0 0.0
      %998 = vmatprep.mubr.f32.mxu0 0.0
      %999 = vmatmul.mubr.f32.gmra.mrb[0].mxu0 %v932
      %v1000 = vpop.f32.mrb[0].mxu0
      %v1001 = vadd.f32 0.0, %v1000
      %v1002 = vpop.f32.mrb[0].mxu0
      %1003 = vdwg.mxu0
      %v1004 = vadd.f32 %v928, %v1001
      %v1005 = vxor.u32 %v1004, 2147483648
      %v1006 = vmul.f32 %v1005, 1.442695
      %v1007 = vpow.pop %v1006
      %v1008 = vadd.f32 %v1007, 1.0
      %v1009 = vrcp.pop %v1008
      %v1010 = vmul.f32 1.0, %v1009
      %v1011 = vtanh.pop %v1004
      %v1012 = vmul.f32 %v1010, %v911
      %1014 = vrot.lane.b32.xlu0 %v1011, 64
      %v1015 = vpop.permute.xlu0 %1014
      %v1017 = vmul.f32 %v1010, %v1015
      %1019 = vrot.lane.b32.xlu0 %v1017, 32
      %v1020 = vpop.permute.xlu0 %1019
      %v1022 = vadd.f32 %v1012, %v1020
      %v1023 = vtanh.pop %v1022
      %1025 = vrot.lane.b32.xlu0 %v1023, 64
      %v1026 = vpop.permute.xlu0 %1025
      %v1028 = vmul.f32 %v1010, %v1026
      // Predicated region
      $region57: #{encoder_forward.1} parent=35 // pred_check
        %p1029 = pneg %p596
      $region58: #{encoder_forward.1} parent=35 // pred_check_branch
        %1031 = sbr.rel (%p1029) target = $region60
      $region59: #{encoder_forward.1} parent=35 // pred_region
        %1033 = vrot.lane.b32.xlu0 %v1028, 32
        %v1034 = vpop.permute.xlu0 %1033
        %s1036 = scalar_lea.vmem [#allocation2], 24
        %1037 = vst.msk [vmem:[%s1036] sm:$0xff] %vm598, %v1034
      $region60: #{encoder_forward.1} parent=35 // pred_fallthru
        _
      %s1038 = scalar_lea.vmem [#allocation3], 32
      %v1039 = vld [vmem:[%s1038] sm:$0xff]
      %1041 = vrot.lane.b32.xlu0 %v1028, 32
      %v1042 = vpop.permute.xlu0 %1041
      %v1043 = vsel %vm598, %v1042, 0
      %1045 = vmatprep.subr.mxu0 0.0
      %1046 = vmatpush1.msra.mxu0 %v270
      %1047 = vmatprep.subr.mxu0 0.0
      %1048 = vmatpush1.msra.mxu0 %v271
      %1049 = vmatprep.subr.mxu0 0.0
      %1050 = vmatpush1.msra.mxu0 %v272
      %1051 = vmatprep.subr.mxu0 0.0
      %1052 = vmatpush1.msra.mxu0 %v273
      %1053 = vmatprep.subr.mxu0 0.0
      %1054 = vmatpush1.msra.mxu0 0.0
      %1055 = vmatprep.subr.mxu0 0.0
      %1056 = vmatpush1.msra.mxu0 0.0
      %1057 = vmatprep.subr.mxu0 0.0
      %1058 = vmatpush1.msra.mxu0 0.0
      %1059 = vmatprep.subr.mxu0 0.0
      %1060 = vmatpush1.msra.mxu0 0.0
      %1061 = vmatprep.subr.mxu0 0.0
      %1062 = vmatpush1.msra.mxu0 0.0
      %1063 = vmatprep.subr.mxu0 0.0
      %1064 = vmatpush1.msra.mxu0 0.0
      %1065 = vmatprep.subr.mxu0 0.0
      %1066 = vmatpush1.msra.mxu0 0.0
      %1067 = vmatprep.subr.mxu0 0.0
      %1068 = vmatpush1.msra.mxu0 0.0
      %1069 = vmatprep.subr.mxu0 0.0
      %1070 = vmatpush1.msra.mxu0 0.0
      %1071 = vmatprep.subr.mxu0 0.0
      %1072 = vmatpush1.msra.mxu0 0.0
      %1073 = vmatprep.subr.mxu0 0.0
      %1074 = vmatpush1.msra.mxu0 0.0
      %1075 = vmatprep.subr.mxu0 0.0
      %1076 = vmatpush1.msra.mxu0 0.0
      %1077 = vmatprep.subr.mxu0 0.0
      %1078 = vmatpush1.msra.mxu0 0.0
      %1079 = vmatprep.subr.mxu0 0.0
      %1080 = vmatpush1.msra.mxu0 0.0
      %1081 = vmatprep.subr.mxu0 0.0
      %1082 = vmatpush1.msra.mxu0 0.0
      %1083 = vmatprep.subr.mxu0 0.0
      %1084 = vmatpush1.msra.mxu0 0.0
      %1085 = vmatprep.subr.mxu0 0.0
      %1086 = vmatpush1.msra.mxu0 0.0
      %1087 = vmatprep.subr.mxu0 0.0
      %1088 = vmatpush1.msra.mxu0 0.0
      %1089 = vmatprep.subr.mxu0 0.0
      %1090 = vmatpush1.msra.mxu0 0.0
      %1091 = vmatprep.subr.mxu0 0.0
      %1092 = vmatpush1.msra.mxu0 0.0
      %1093 = vmatprep.subr.mxu0 0.0
      %1094 = vmatpush1.msra.mxu0 0.0
      %1095 = vmatprep.subr.mxu0 0.0
      %1096 = vmatpush1.msra.mxu0 0.0
      %1097 = vmatprep.subr.mxu0 0.0
      %1098 = vmatpush1.msra.mxu0 0.0
      %1099 = vmatprep.subr.mxu0 0.0
      %1100 = vmatpush1.msra.mxu0 0.0
      %1101 = vmatprep.subr.mxu0 0.0
      %1102 = vmatpush1.msra.mxu0 0.0
      %1103 = vmatprep.subr.mxu0 0.0
      %1104 = vmatpush1.msra.mxu0 0.0
      %1105 = vmatprep.subr.mxu0 0.0
      %1106 = vmatpush1.msra.mxu0 0.0
      %1107 = vmatprep.subr.mxu0 0.0
      %1108 = vmatpush1.msra.mxu0 0.0
      %1109 = vmatprep.mubr.f32.mxu0 0.0
      %1110 = vmatmul.mubr.f32.gmra.mrb[0].mxu0 %v1043
      %v1111 = vpop.f32.mrb[0].mxu0
      %v1112 = vadd.f32 0.0, %v1111
      %v1113 = vpop.f32.mrb[0].mxu0
      %1114 = vdwg.mxu0
      %v1115 = vadd.f32 %v1039, %v1112
      %v1116 = vxor.u32 %v1115, 2147483648
      %v1117 = vmul.f32 %v1116, 1.442695
      %v1118 = vpow.pop %v1117
      %v1119 = vadd.f32 %v1118, 1.0
      %v1120 = vrcp.pop %v1119
      %v1121 = vmul.f32 1.0, %v1120
      %v1122 = vtanh.pop %v1115
      %v1123 = vmul.f32 %v1121, %v1022
      %1125 = vrot.lane.b32.xlu0 %v1122, 64
      %v1126 = vpop.permute.xlu0 %1125
      %v1128 = vmul.f32 %v1121, %v1126
      %1130 = vrot.lane.b32.xlu0 %v1128, 32
      %v1131 = vpop.permute.xlu0 %1130
      %v1133 = vadd.f32 %v1123, %v1131
      %v1134 = vtanh.pop %v1133
      %1136 = vrot.lane.b32.xlu0 %v1134, 64
      %v1137 = vpop.permute.xlu0 %1136
      %v1139 = vmul.f32 %v1121, %v1137
      // Predicated region
      $region61: #{encoder_forward.1} parent=35 // pred_check
        %p1140 = pneg %p596
      $region62: #{encoder_forward.1} parent=35 // pred_check_branch
        %1142 = sbr.rel (%p1140) target = $region64
      $region63: #{encoder_forward.1} parent=35 // pred_region
        %1144 = vrot.lane.b32.xlu0 %v1139, 32
        %v1145 = vpop.permute.xlu0 %1144
        %s1147 = scalar_lea.vmem [#allocation2], 32
        %1148 = vst.msk [vmem:[%s1147] sm:$0xff] %vm598, %v1145
      $region64: #{encoder_forward.1} parent=35 // pred_fallthru
        _
      %s1149 = scalar_lea.vmem [#allocation3], 40
      %v1150 = vld [vmem:[%s1149] sm:$0xff]
      %1152 = vrot.lane.b32.xlu0 %v1139, 32
      %v1153 = vpop.permute.xlu0 %1152
      %v1154 = vsel %vm598, %v1153, 0
      %1156 = vmatprep.subr.mxu0 0.0
      %1157 = vmatpush1.msra.mxu0 %v270
      %1158 = vmatprep.subr.mxu0 0.0
      %1159 = vmatpush1.msra.mxu0 %v271
      %1160 = vmatprep.subr.mxu0 0.0
      %1161 = vmatpush1.msra.mxu0 %v272
      %1162 = vmatprep.subr.mxu0 0.0
      %1163 = vmatpush1.msra.mxu0 %v273
      %1164 = vmatprep.subr.mxu0 0.0
      %1165 = vmatpush1.msra.mxu0 0.0
      %1166 = vmatprep.subr.mxu0 0.0
      %1167 = vmatpush1.msra.mxu0 0.0
      %1168 = vmatprep.subr.mxu0 0.0
      %1169 = vmatpush1.msra.mxu0 0.0
      %1170 = vmatprep.subr.mxu0 0.0
      %1171 = vmatpush1.msra.mxu0 0.0
      %1172 = vmatprep.subr.mxu0 0.0
      %1173 = vmatpush1.msra.mxu0 0.0
      %1174 = vmatprep.subr.mxu0 0.0
      %1175 = vmatpush1.msra.mxu0 0.0
      %1176 = vmatprep.subr.mxu0 0.0
      %1177 = vmatpush1.msra.mxu0 0.0
      %1178 = vmatprep.subr.mxu0 0.0
      %1179 = vmatpush1.msra.mxu0 0.0
      %1180 = vmatprep.subr.mxu0 0.0
      %1181 = vmatpush1.msra.mxu0 0.0
      %1182 = vmatprep.subr.mxu0 0.0
      %1183 = vmatpush1.msra.mxu0 0.0
      %1184 = vmatprep.subr.mxu0 0.0
      %1185 = vmatpush1.msra.mxu0 0.0
      %1186 = vmatprep.subr.mxu0 0.0
      %1187 = vmatpush1.msra.mxu0 0.0
      %1188 = vmatprep.subr.mxu0 0.0
      %1189 = vmatpush1.msra.mxu0 0.0
      %1190 = vmatprep.subr.mxu0 0.0
      %1191 = vmatpush1.msra.mxu0 0.0
      %1192 = vmatprep.subr.mxu0 0.0
      %1193 = vmatpush1.msra.mxu0 0.0
      %1194 = vmatprep.subr.mxu0 0.0
      %1195 = vmatpush1.msra.mxu0 0.0
      %1196 = vmatprep.subr.mxu0 0.0
      %1197 = vmatpush1.msra.mxu0 0.0
      %1198 = vmatprep.subr.mxu0 0.0
      %1199 = vmatpush1.msra.mxu0 0.0
      %1200 = vmatprep.subr.mxu0 0.0
      %1201 = vmatpush1.msra.mxu0 0.0
      %1202 = vmatprep.subr.mxu0 0.0
      %1203 = vmatpush1.msra.mxu0 0.0
      %1204 = vmatprep.subr.mxu0 0.0
      %1205 = vmatpush1.msra.mxu0 0.0
      %1206 = vmatprep.subr.mxu0 0.0
      %1207 = vmatpush1.msra.mxu0 0.0
      %1208 = vmatprep.subr.mxu0 0.0
      %1209 = vmatpush1.msra.mxu0 0.0
      %1210 = vmatprep.subr.mxu0 0.0
      %1211 = vmatpush1.msra.mxu0 0.0
      %1212 = vmatprep.subr.mxu0 0.0
      %1213 = vmatpush1.msra.mxu0 0.0
      %1214 = vmatprep.subr.mxu0 0.0
      %1215 = vmatpush1.msra.mxu0 0.0
      %1216 = vmatprep.subr.mxu0 0.0
      %1217 = vmatpush1.msra.mxu0 0.0
      %1218 = vmatprep.subr.mxu0 0.0
      %1219 = vmatpush1.msra.mxu0 0.0
      %1220 = vmatprep.mubr.f32.mxu0 0.0
      %1221 = vmatmul.mubr.f32.gmra.mrb[0].mxu0 %v1154
      %v1222 = vpop.f32.mrb[0].mxu0
      %v1223 = vadd.f32 0.0, %v1222
      %v1224 = vpop.f32.mrb[0].mxu0
      %1225 = vdwg.mxu0
      %v1226 = vadd.f32 %v1150, %v1223
      %v1227 = vxor.u32 %v1226, 2147483648
      %v1228 = vmul.f32 %v1227, 1.442695
      %v1229 = vpow.pop %v1228
      %v1230 = vadd.f32 %v1229, 1.0
      %v1231 = vrcp.pop %v1230
      %v1232 = vmul.f32 1.0, %v1231
      %v1233 = vtanh.pop %v1226
      %v1234 = vmul.f32 %v1232, %v1133
      %1236 = vrot.lane.b32.xlu0 %v1233, 64
      %v1237 = vpop.permute.xlu0 %1236
      %v1239 = vmul.f32 %v1232, %v1237
      %1241 = vrot.lane.b32.xlu0 %v1239, 32
      %v1242 = vpop.permute.xlu0 %1241
      %v1244 = vadd.f32 %v1234, %v1242
      %v1245 = vtanh.pop %v1244
      %1247 = vrot.lane.b32.xlu0 %v1245, 64
      %v1248 = vpop.permute.xlu0 %1247
      %v1250 = vmul.f32 %v1232, %v1248
      // Predicated region
      $region65: #{encoder_forward.1} parent=35 // pred_check
        %p1251 = pneg %p596
      $region66: #{encoder_forward.1} parent=35 // pred_check_branch
        %1253 = sbr.rel (%p1251) target = $region68
      $region67: #{encoder_forward.1} parent=35 // pred_region
        %1255 = vrot.lane.b32.xlu0 %v1250, 32
        %v1256 = vpop.permute.xlu0 %1255
        %s1258 = scalar_lea.vmem [#allocation2], 40
        %1259 = vst.msk [vmem:[%s1258] sm:$0xff] %vm598, %v1256
      $region68: #{encoder_forward.1} parent=35 // pred_fallthru
        _
      %s1260 = scalar_lea.vmem [#allocation3], 48
      %v1261 = vld [vmem:[%s1260] sm:$0xff]
      %1263 = vrot.lane.b32.xlu0 %v1250, 32
      %v1264 = vpop.permute.xlu0 %1263
      %v1265 = vsel %vm598, %v1264, 0
      %1267 = vmatprep.subr.mxu0 0.0
      %1268 = vmatpush1.msra.mxu0 %v270
      %1269 = vmatprep.subr.mxu0 0.0
      %1270 = vmatpush1.msra.mxu0 %v271
      %1271 = vmatprep.subr.mxu0 0.0
      %1272 = vmatpush1.msra.mxu0 %v272
      %1273 = vmatprep.subr.mxu0 0.0
      %1274 = vmatpush1.msra.mxu0 %v273
      %1275 = vmatprep.subr.mxu0 0.0
      %1276 = vmatpush1.msra.mxu0 0.0
      %1277 = vmatprep.subr.mxu0 0.0
      %1278 = vmatpush1.msra.mxu0 0.0
      %1279 = vmatprep.subr.mxu0 0.0
      %1280 = vmatpush1.msra.mxu0 0.0
      %1281 = vmatprep.subr.mxu0 0.0
      %1282 = vmatpush1.msra.mxu0 0.0
      %1283 = vmatprep.subr.mxu0 0.0
      %1284 = vmatpush1.msra.mxu0 0.0
      %1285 = vmatprep.subr.mxu0 0.0
      %1286 = vmatpush1.msra.mxu0 0.0
      %1287 = vmatprep.subr.mxu0 0.0
      %1288 = vmatpush1.msra.mxu0 0.0
      %1289 = vmatprep.subr.mxu0 0.0
      %1290 = vmatpush1.msra.mxu0 0.0
      %1291 = vmatprep.subr.mxu0 0.0
      %1292 = vmatpush1.msra.mxu0 0.0
      %1293 = vmatprep.subr.mxu0 0.0
      %1294 = vmatpush1.msra.mxu0 0.0
      %1295 = vmatprep.subr.mxu0 0.0
      %1296 = vmatpush1.msra.mxu0 0.0
      %1297 = vmatprep.subr.mxu0 0.0
      %1298 = vmatpush1.msra.mxu0 0.0
      %1299 = vmatprep.subr.mxu0 0.0
      %1300 = vmatpush1.msra.mxu0 0.0
      %1301 = vmatprep.subr.mxu0 0.0
      %1302 = vmatpush1.msra.mxu0 0.0
      %1303 = vmatprep.subr.mxu0 0.0
      %1304 = vmatpush1.msra.mxu0 0.0
      %1305 = vmatprep.subr.mxu0 0.0
      %1306 = vmatpush1.msra.mxu0 0.0
      %1307 = vmatprep.subr.mxu0 0.0
      %1308 = vmatpush1.msra.mxu0 0.0
      %1309 = vmatprep.subr.mxu0 0.0
      %1310 = vmatpush1.msra.mxu0 0.0
      %1311 = vmatprep.subr.mxu0 0.0
      %1312 = vmatpush1.msra.mxu0 0.0
      %1313 = vmatprep.subr.mxu0 0.0
      %1314 = vmatpush1.msra.mxu0 0.0
      %1315 = vmatprep.subr.mxu0 0.0
      %1316 = vmatpush1.msra.mxu0 0.0
      %1317 = vmatprep.subr.mxu0 0.0
      %1318 = vmatpush1.msra.mxu0 0.0
      %1319 = vmatprep.subr.mxu0 0.0
      %1320 = vmatpush1.msra.mxu0 0.0
      %1321 = vmatprep.subr.mxu0 0.0
      %1322 = vmatpush1.msra.mxu0 0.0
      %1323 = vmatprep.subr.mxu0 0.0
      %1324 = vmatpush1.msra.mxu0 0.0
      %1325 = vmatprep.subr.mxu0 0.0
      %1326 = vmatpush1.msra.mxu0 0.0
      %1327 = vmatprep.subr.mxu0 0.0
      %1328 = vmatpush1.msra.mxu0 0.0
      %1329 = vmatprep.subr.mxu0 0.0
      %1330 = vmatpush1.msra.mxu0 0.0
      %1331 = vmatprep.mubr.f32.mxu0 0.0
      %1332 = vmatmul.mubr.f32.gmra.mrb[0].mxu0 %v1265
      %v1333 = vpop.f32.mrb[0].mxu0
      %v1334 = vadd.f32 0.0, %v1333
      %v1335 = vpop.f32.mrb[0].mxu0
      %1336 = vdwg.mxu0
      %v1337 = vadd.f32 %v1261, %v1334
      %v1338 = vxor.u32 %v1337, 2147483648
      %v1339 = vmul.f32 %v1338, 1.442695
      %v1340 = vpow.pop %v1339
      %v1341 = vadd.f32 %v1340, 1.0
      %v1342 = vrcp.pop %v1341
      %v1343 = vmul.f32 1.0, %v1342
      %v1344 = vtanh.pop %v1337
      %v1345 = vmul.f32 %v1343, %v1244
      %1347 = vrot.lane.b32.xlu0 %v1344, 64
      %v1348 = vpop.permute.xlu0 %1347
      %v1350 = vmul.f32 %v1343, %v1348
      %1352 = vrot.lane.b32.xlu0 %v1350, 32
      %v1353 = vpop.permute.xlu0 %1352
      %v1355 = vadd.f32 %v1345, %v1353
      %v1356 = vtanh.pop %v1355
      %1358 = vrot.lane.b32.xlu0 %v1356, 64
      %v1359 = vpop.permute.xlu0 %1358
      %v1361 = vmul.f32 %v1343, %v1359
      // Predicated region
      $region69: #{encoder_forward.1} parent=35 // pred_check
        %p1362 = pneg %p596
      $region70: #{encoder_forward.1} parent=35 // pred_check_branch
        %1364 = sbr.rel (%p1362) target = $region72
      $region71: #{encoder_forward.1} parent=35 // pred_region
        %1366 = vrot.lane.b32.xlu0 %v1361, 32
        %v1367 = vpop.permute.xlu0 %1366
        %s1369 = scalar_lea.vmem [#allocation2], 48
        %1370 = vst.msk [vmem:[%s1369] sm:$0xff] %vm598, %v1367
      $region72: #{encoder_forward.1} parent=35 // pred_fallthru
        _
      %s1371 = scalar_lea.vmem [#allocation3], 56
      %v1372 = vld [vmem:[%s1371] sm:$0xff]
      %1374 = vrot.lane.b32.xlu0 %v1361, 32
      %v1375 = vpop.permute.xlu0 %1374
      %v1376 = vsel %vm598, %v1375, 0
      %1378 = vmatprep.subr.mxu0 0.0
      %1379 = vmatpush1.msra.mxu0 %v270
      %1380 = vmatprep.subr.mxu0 0.0
      %1381 = vmatpush1.msra.mxu0 %v271
      %1382 = vmatprep.subr.mxu0 0.0
      %1383 = vmatpush1.msra.mxu0 %v272
      %1384 = vmatprep.subr.mxu0 0.0
      %1385 = vmatpush1.msra.mxu0 %v273
      %1386 = vmatprep.subr.mxu0 0.0
      %1387 = vmatpush1.msra.mxu0 0.0
      %1388 = vmatprep.subr.mxu0 0.0
      %1389 = vmatpush1.msra.mxu0 0.0
      %1390 = vmatprep.subr.mxu0 0.0
      %1391 = vmatpush1.msra.mxu0 0.0
      %1392 = vmatprep.subr.mxu0 0.0
      %1393 = vmatpush1.msra.mxu0 0.0
      %1394 = vmatprep.subr.mxu0 0.0
      %1395 = vmatpush1.msra.mxu0 0.0
      %1396 = vmatprep.subr.mxu0 0.0
      %1397 = vmatpush1.msra.mxu0 0.0
      %1398 = vmatprep.subr.mxu0 0.0
      %1399 = vmatpush1.msra.mxu0 0.0
      %1400 = vmatprep.subr.mxu0 0.0
      %1401 = vmatpush1.msra.mxu0 0.0
      %1402 = vmatprep.subr.mxu0 0.0
      %1403 = vmatpush1.msra.mxu0 0.0
      %1404 = vmatprep.subr.mxu0 0.0
      %1405 = vmatpush1.msra.mxu0 0.0
      %1406 = vmatprep.subr.mxu0 0.0
      %1407 = vmatpush1.msra.mxu0 0.0
      %1408 = vmatprep.subr.mxu0 0.0
      %1409 = vmatpush1.msra.mxu0 0.0
      %1410 = vmatprep.subr.mxu0 0.0
      %1411 = vmatpush1.msra.mxu0 0.0
      %1412 = vmatprep.subr.mxu0 0.0
      %1413 = vmatpush1.msra.mxu0 0.0
      %1414 = vmatprep.subr.mxu0 0.0
      %1415 = vmatpush1.msra.mxu0 0.0
      %1416 = vmatprep.subr.mxu0 0.0
      %1417 = vmatpush1.msra.mxu0 0.0
      %1418 = vmatprep.subr.mxu0 0.0
      %1419 = vmatpush1.msra.mxu0 0.0
      %1420 = vmatprep.subr.mxu0 0.0
      %1421 = vmatpush1.msra.mxu0 0.0
      %1422 = vmatprep.subr.mxu0 0.0
      %1423 = vmatpush1.msra.mxu0 0.0
      %1424 = vmatprep.subr.mxu0 0.0
      %1425 = vmatpush1.msra.mxu0 0.0
      %1426 = vmatprep.subr.mxu0 0.0
      %1427 = vmatpush1.msra.mxu0 0.0
      %1428 = vmatprep.subr.mxu0 0.0
      %1429 = vmatpush1.msra.mxu0 0.0
      %1430 = vmatprep.subr.mxu0 0.0
      %1431 = vmatpush1.msra.mxu0 0.0
      %1432 = vmatprep.subr.mxu0 0.0
      %1433 = vmatpush1.msra.mxu0 0.0
      %1434 = vmatprep.subr.mxu0 0.0
      %1435 = vmatpush1.msra.mxu0 0.0
      %1436 = vmatprep.subr.mxu0 0.0
      %1437 = vmatpush1.msra.mxu0 0.0
      %1438 = vmatprep.subr.mxu0 0.0
      %1439 = vmatpush1.msra.mxu0 0.0
      %1440 = vmatprep.subr.mxu0 0.0
      %1441 = vmatpush1.msra.mxu0 0.0
      %1442 = vmatprep.mubr.f32.mxu0 0.0
      %1443 = vmatmul.mubr.f32.gmra.mrb[0].mxu0 %v1376
      %v1444 = vpop.f32.mrb[0].mxu0
      %v1445 = vadd.f32 0.0, %v1444
      %v1446 = vpop.f32.mrb[0].mxu0
      %1447 = vdwg.mxu0
      %v1448 = vadd.f32 %v1372, %v1445
      %v1449 = vxor.u32 %v1448, 2147483648
      %v1450 = vmul.f32 %v1449, 1.442695
      %v1451 = vpow.pop %v1450
      %v1452 = vadd.f32 %v1451, 1.0
      %v1453 = vrcp.pop %v1452
      %v1454 = vmul.f32 1.0, %v1453
      %v1455 = vtanh.pop %v1448
      %v1456 = vmul.f32 %v1454, %v1355
      %1458 = vrot.lane.b32.xlu0 %v1455, 64
      %v1459 = vpop.permute.xlu0 %1458
      %v1461 = vmul.f32 %v1454, %v1459
      %1463 = vrot.lane.b32.xlu0 %v1461, 32
      %v1464 = vpop.permute.xlu0 %1463
      %v1466 = vadd.f32 %v1456, %v1464
      %v1467 = vtanh.pop %v1466
      %1469 = vrot.lane.b32.xlu0 %v1467, 64
      %v1470 = vpop.permute.xlu0 %1469
      %v1472 = vmul.f32 %v1454, %v1470
      // Predicated region
      $region73: #{encoder_forward.1} parent=35 // pred_check
        %p1473 = pneg %p596
      $region74: #{encoder_forward.1} parent=35 // pred_check_branch
        %1475 = sbr.rel (%p1473) target = $region76
      $region75: #{encoder_forward.1} parent=35 // pred_region
        %1477 = vrot.lane.b32.xlu0 %v1472, 32
        %v1478 = vpop.permute.xlu0 %1477
        %s1480 = scalar_lea.vmem [#allocation2], 56
        %1481 = vst.msk [vmem:[%s1480] sm:$0xff] %vm598, %v1478
      $region76: #{encoder_forward.1} parent=35 // pred_fallthru
        _
      %1483 = vrot.lane.b32.xlu0 %v1472, 32
      %v1484 = vpop.permute.xlu0 %1483
      %1486 = vst.msk [vmem:[%s269] sm:$0xff] %vm598, %v1484
      %vm1487 = vcmask 523520
      %1488 = vst.msk [vmem:[%s269] sm:$0xff] %vm1487, %v1466
      %p1489 = scmp.lt.s32.totalorder %s20, 1
      %s1490 = scalar_select %p1489, %s20, 1
      %p1491 = scmp.lt.s32.totalorder %s19, 0
      %s1492 = scalar_select %p1491, %s19, 0
      %s1493 = sadd.s32 %s1492, %s1490
      %s1494 = smul.addr %s1493, 8
      %s1495 = scalar_lea.vmem %s4, %s1494
      // Predicated region
      $region77: #{encoder_forward.1} parent=35 // pred_check
        %p1496 = pneg %p151
      $region78: #{encoder_forward.1} parent=35 // pred_check_branch
        %1498 = sbr.rel (%p1496) target = $region80
      $region79: #{encoder_forward.1} parent=35 // pred_region
        _
      $region80: #{encoder_forward.1} parent=35 // pred_fallthru
        _
    $region36: #{encoder_forward.1} parent=5 // pred_fallthru
      _
    %p1499 = scmp.le.s32.totalorder 2, %s10
    // Predicated region
    $region81: #{encoder_forward.1} parent=5 // pred_check
      %p1500 = pneg %p1499
    $region82: #{encoder_forward.1} parent=5 // pred_check_branch
      %1502 = sbr.rel (%p1500) target = $region84
    $region83: #{encoder_forward.1} parent=5 // pred_region
      %s1503 = ssub.s32 %s10, 2
      // Predicated region
      $region85: #{encoder_forward.1} parent=83 // pred_check
        %p1504 = pneg %p157
      $region86: #{encoder_forward.1} parent=83 // pred_check_branch
        %1506 = sbr.rel (%p1504) target = $region88
      $region87: #{encoder_forward.1} parent=83 // pred_region
        %p1507 = scmp.lt.s32.totalorder %s22, 1
        %s1508 = scalar_select %p1507, %s22, 1
        %p1509 = scmp.lt.s32.totalorder %s21, 0
        %s1510 = scalar_select %p1509, %s21, 0
        %s1511 = sadd.s32 %s1510, %s1508
        %s1512 = smul.addr %s1511, 8
        %s1513 = scalar_lea.vmem %s4, %s1512
      $region88: #{encoder_forward.1} parent=83 // pred_fallthru
        _
    $region84: #{encoder_forward.1} parent=5 // pred_fallthru
      _
  $region6: #{encoder_forward.1} parent=0 // loop_footer
    %s14 = sadd.s32 1, %s10
  $region7: #{encoder_forward.1} parent=0 // loop_footer_branch
    %9 = sbr.rel target = $region3
  $region8: #{encoder_forward.1} parent=0 // loop_exit
    _

</llo_original>
